<compile_context>
chip_gen: v6e
topology: v6e:2x2x1
jax: 0.10.0
libtpu: 0.0.40
codegen_flags: <defaults>
</compile_context>

<pallas_src>
import functools
import math

import jax
import jax.numpy as jnp
from jax.experimental import pallas as pl
from jax.experimental.pallas import tpu as pltpu


def _pick_tile(dim, prefs):
    """Largest preferred tile that evenly divides `dim`, else the full dim."""
    for p in prefs:
        if dim % p == 0:
            return p
    return dim


# ----------------------------------------------------------------------------
# Kernel 1: tiled linear  y = x @ W + b
#   x: (M, Cin) bf16, W: (Cin, Cout) bf16, b: (1, Cout) f32
#   grid = (M//tm, Cout//tn, Cin//tk); f32 accumulator; bias added at last k.
# ----------------------------------------------------------------------------
def _linear_kernel(x_ref, w_ref, b_ref, o_ref, acc_ref):
    k = pl.program_id(2)

    @pl.when(k == 0)
    def _():
        acc_ref[...] = jnp.zeros_like(acc_ref)

    acc_ref[...] += jnp.dot(x_ref[...], w_ref[...],
                            preferred_element_type=jnp.float32)

    @pl.when(k == pl.num_programs(2) - 1)
    def _():
        o_ref[...] = (acc_ref[...] + b_ref[...]).astype(o_ref.dtype)


def linear(x, w, b, *, out_dtype=jnp.float32):
    M, Cin = x.shape
    Cout = w.shape[1]
    tm = _pick_tile(M, (256, 128))
    tn = _pick_tile(Cout, (256, 128))
    tk = _pick_tile(Cin, (512, 256, 128))
    grid = (M // tm, Cout // tn, Cin // tk)
    return pl.pallas_call(
        _linear_kernel,
        out_shape=jax.ShapeDtypeStruct((M, Cout), out_dtype),
        grid=grid,
        in_specs=[
            pl.BlockSpec((tm, tk), lambda i, j, k: (i, k)),
            pl.BlockSpec((tk, tn), lambda i, j, k: (k, j)),
            pl.BlockSpec((1, tn), lambda i, j, k: (0, j)),
        ],
        out_specs=pl.BlockSpec((tm, tn), lambda i, j, k: (i, j)),
        scratch_shapes=[pltpu.VMEM((tm, tn), jnp.float32)],
        compiler_params=pltpu.CompilerParams(
            dimension_semantics=("parallel", "parallel", "arbitrary")),
    )(x, w, b)


# ----------------------------------------------------------------------------
# Kernel 2: flash-attention style causal attention.
#   q, k, v: (B, H, T, hd) bf16; grid = (B, H, T//bq, T//bkv); online softmax
#   state (m, l, acc) lives in VMEM scratch; kv blocks above the diagonal are
#   skipped; the mask is only computed on diagonal-crossing blocks.
# ----------------------------------------------------------------------------
def _flash_attn_kernel(q_ref, k_ref, v_ref, o_ref, m_ref, l_ref, acc_ref,
                       *, block_q, block_kv, scale):
    qi = pl.program_id(2)
    ki = pl.program_id(3)

    @pl.when(ki == 0)
    def _():
        m_ref[...] = jnp.full_like(m_ref, -jnp.inf)
        l_ref[...] = jnp.zeros_like(l_ref)
        acc_ref[...] = jnp.zeros_like(acc_ref)

    q_start = qi * block_q
    kv_start = ki * block_kv

    def process(apply_mask):
        q = q_ref[0, 0]                                  # (block_q, hd) bf16
        k = k_ref[0, 0]                                  # (block_kv, hd) bf16
        v = v_ref[0, 0]                                  # (block_kv, hd) bf16
        # QK^T: contract last dims directly (no explicit transpose of K).
        s = jax.lax.dot_general(
            q, k, dimension_numbers=(((1,), (1,)), ((), ())),
            preferred_element_type=jnp.float32)          # (block_q, block_kv)
        s = s * scale                                    # exact f32 scaling
        if apply_mask:
            row = q_start + jax.lax.broadcasted_iota(jnp.int32, s.shape, 0)
            col = kv_start + jax.lax.broadcasted_iota(jnp.int32, s.shape, 1)
            s = jnp.where(col <= row, s, -1e30)          # finite, NaN-safe
        m_prev = m_ref[...]
        m_new = jnp.maximum(m_prev, jnp.max(s, axis=-1, keepdims=True))
        alpha = jnp.exp(m_prev - m_new)
        p = jnp.exp(s - m_new)
        l_ref[...] = alpha * l_ref[...] + jnp.sum(p, axis=-1, keepdims=True)
        acc_ref[...] = alpha * acc_ref[...] + jnp.dot(
            p.astype(v.dtype), v, preferred_element_type=jnp.float32)
        m_ref[...] = m_new

    fully_visible = kv_start + (block_kv - 1) <= q_start
    on_diagonal = jnp.logical_and(kv_start + (block_kv - 1) > q_start,
                                  kv_start <= q_start + (block_q - 1))
    # Blocks entirely above the diagonal are skipped (no score / exp work).

    @pl.when(fully_visible)
    def _():
        process(apply_mask=False)

    @pl.when(on_diagonal)
    def _():
        process(apply_mask=True)

    @pl.when(ki == pl.num_programs(3) - 1)
    def _():
        o_ref[0, 0] = (acc_ref[...] *
                       pl.reciprocal(l_ref[...], approx=True)).astype(o_ref.dtype)


def flash_attention(q, k, v, *, scale):
    B, H, T, hd = q.shape
    block_q = _pick_tile(T, (256, 128))
    block_kv = _pick_tile(T, (512, 256, 128))
    grid = (B, H, T // block_q, T // block_kv)
    kernel = functools.partial(_flash_attn_kernel,
                               block_q=block_q, block_kv=block_kv, scale=scale)
    return pl.pallas_call(
        kernel,
        out_shape=jax.ShapeDtypeStruct((B, H, T, hd), q.dtype),
        grid=grid,
        in_specs=[
            pl.BlockSpec((1, 1, block_q, hd), lambda b, h, qi, ki: (b, h, qi, 0)),
            pl.BlockSpec((1, 1, block_kv, hd), lambda b, h, qi, ki: (b, h, ki, 0)),
            pl.BlockSpec((1, 1, block_kv, hd), lambda b, h, qi, ki: (b, h, ki, 0)),
        ],
        out_specs=pl.BlockSpec((1, 1, block_q, hd),
                               lambda b, h, qi, ki: (b, h, qi, 0)),
        scratch_shapes=[
            pltpu.VMEM((block_q, 1), jnp.float32),   # running max m
            pltpu.VMEM((block_q, 1), jnp.float32),   # running denom l
            pltpu.VMEM((block_q, hd), jnp.float32),  # output accumulator
        ],
        compiler_params=pltpu.CompilerParams(
            dimension_semantics=("parallel", "parallel", "parallel", "arbitrary")),
    )(q, k, v)


# ----------------------------------------------------------------------------
# Module wrapper: CausalSelfAttention.forward
# ----------------------------------------------------------------------------
def causal_self_attention(x, params, n_head):
    B, T, C = x.shape
    hd = C // n_head
    scale = 1.0 / math.sqrt(hd)

    # qkv = self.c_attn(x)  — B folded into M, bf16 matmul inputs.
    x2 = x.reshape(B * T, C).astype(jnp.bfloat16)
    qkv = linear(x2, params["w_attn"].astype(jnp.bfloat16), params["b_attn"],
                 out_dtype=jnp.bfloat16)                      # (B*T, 3C)

    # split + view + transpose -> (B, n_head, T, head_dim), still bf16.
    # TODO(synk): fold this layout change into the linear/attention BlockSpecs
    # (needs a head-strided BlockSpec, i.e. hd a multiple of 128) to remove
    # the extra HBM pass entirely.
    qkv = qkv.reshape(B, T, 3, n_head, hd).transpose(2, 0, 3, 1, 4)
    q, k, v = qkv[0], qkv[1], qkv[2]                          # (B, H, T, hd)

    # y = F.scaled_dot_product_attention(q, k, v, is_causal=True)
    y = flash_attention(q, k, v, scale=scale)                 # (B, H, T, hd) bf16

    # merge heads back, then y = self.c_proj(y)  (f32 output, as in the module)
    y = y.transpose(0, 2, 1, 3).reshape(B * T, C)
    out = linear(y, params["w_proj"].astype(jnp.bfloat16), params["b_proj"],
                 out_dtype=jnp.float32)
    return out.reshape(B, T, C)


# ----------------------------------------------------------------------------
# Pure-JAX reference (f32) for a numerical sanity check.
# ----------------------------------------------------------------------------
def reference(x, params, n_head):
    B, T, C = x.shape
    hd = C // n_head
    qkv = x.reshape(B * T, C) @ params["w_attn"] + params["b_attn"]
    qkv = qkv.reshape(B, T, 3 * C)
    q, k, v = jnp.split(qkv, 3, axis=-1)
    q = q.reshape(B, T, n_head, hd).transpose(0, 2, 1, 3)
    k = k.reshape(B, T, n_head, hd).transpose(0, 2, 1, 3)
    v = v.reshape(B, T, n_head, hd).transpose(0, 2, 1, 3)
    s = jnp.einsum("bhqd,bhkd->bhqk", q, k) / math.sqrt(hd)
    mask = jnp.tril(jnp.ones((T, T), dtype=bool))
    s = jnp.where(mask, s, -jnp.inf)
    p = jax.nn.softmax(s, axis=-1)
    y = jnp.einsum("bhqk,bhkd->bhqd", p, v)
    y = y.transpose(0, 2, 1, 3).reshape(B * T, C)
    out = y @ params["w_proj"] + params["b_proj"]
    return out.reshape(B, T, C)


# ----------------------------------------------------------------------------
# Deterministic parameter init (nn.Linear shapes, stored transposed (in, out)).
# ----------------------------------------------------------------------------
def init_params(key, n_embd):
    k1, k2, k3, k4 = jax.random.split(key, 4)
    std = 0.02
    return {
        "w_attn": jax.random.normal(k1, (n_embd, 3 * n_embd), jnp.float32) * std,
        "b_attn": jnp.reshape(
            jax.random.normal(k2, (3 * n_embd,), jnp.float32) * std,
            (1, 3 * n_embd)),
        "w_proj": jax.random.normal(k3, (n_embd, n_embd), jnp.float32) * std,
        "b_proj": jnp.reshape(
            jax.random.normal(k4, (n_embd,), jnp.float32) * std, (1, n_embd)),
    }


if __name__ == "__main__":
    # Small config consistent with the module: n_embd % n_head == 0
    B, T, n_embd, n_head = 2, 8, 32, 4

    key = jax.random.PRNGKey(0)
    kx, kp = jax.random.split(key)
    x = jax.random.normal(kx, (B, T, n_embd), jnp.float32)
    params = init_params(kp, n_embd)

    fn = jax.jit(functools.partial(causal_self_attention, n_head=n_head))
    y = fn(x, params)
    jax.block_until_ready(y)
    assert y.shape == (B, T, n_embd)
    assert bool(jnp.all(jnp.isfinite(y)))

    # Loose-tolerance check against an f32 reference (kernel runs in bf16).
    y_ref = reference(x, params, n_head)
    assert bool(jnp.allclose(y, y_ref, atol=5e-2, rtol=5e-2))

    print("KERNEL_OK")
</pallas_src>

<mosaic_0001>
module attributes {stable_mosaic.version = 11 : i64} {
  func.func @_linear_kernel(%arg0: i32, %arg1: i32, %arg2: i32, %arg3: memref<16x32xbf16, #tpu.memory_space<vmem>>, %arg4: memref<32x96xbf16, #tpu.memory_space<vmem>>, %arg5: memref<1x96xf32, #tpu.memory_space<vmem>>, %arg6: memref<16x96xbf16, #tpu.memory_space<vmem>>, %arg7: memref<16x96xf32, #tpu.memory_space<vmem>>) attributes {dimension_semantics = [#tpu.dimension_semantics<parallel>, #tpu.dimension_semantics<parallel>, #tpu.dimension_semantics<arbitrary>], iteration_bounds = array<i64: 1, 1, 1>, scalar_prefetch = 0 : i64, scratch_operands = 1 : i64, tpu.core_type = #tpu.core_type<tc>, window_params = [{transform_indices = @transform_0, window_bounds = array<i64: 16, 32>}, {transform_indices = @transform_1, window_bounds = array<i64: 32, 96>}, {transform_indices = @transform_2, window_bounds = array<i64: 1, 96>}, {transform_indices = @transform_3, window_bounds = array<i64: 16, 96>}]} {
    %c0_i32 = arith.constant 0 : i32
    %0 = arith.cmpi eq, %arg2, %c0_i32 : i32
    %1 = arith.extui %0 : i1 to i32
    %c0_i32_0 = arith.constant 0 : i32
    %2 = arith.cmpi ne, %1, %c0_i32_0 : i32
    scf.if %2 {
      %cst_10 = arith.constant 0.000000e+00 : f32
      %12 = vector.broadcast %cst_10 : f32 to vector<16x96xf32>
      %c0_11 = arith.constant 0 : index
      %c0_12 = arith.constant 0 : index
      %13 = vector.load %arg7[%c0_11, %c0_12] : memref<16x96xf32, #tpu.memory_space<vmem>>, vector<16x96xf32>
      tpu.vector_store %arg7[%c0_11, %c0_12], %12 {strides = array<i32>} : memref<16x96xf32, #tpu.memory_space<vmem>>, vector<16x96xf32>,
    } else {
    }
    %c0 = arith.constant 0 : index
    %c0_1 = arith.constant 0 : index
    %3 = vector.load %arg7[%c0, %c0_1] : memref<16x96xf32, #tpu.memory_space<vmem>>, vector<16x96xf32>
    %c0_2 = arith.constant 0 : index
    %c0_3 = arith.constant 0 : index
    %4 = vector.load %arg3[%c0_2, %c0_3] : memref<16x32xbf16, #tpu.memory_space<vmem>>, vector<16x32xbf16>
    %c0_4 = arith.constant 0 : index
    %c0_5 = arith.constant 0 : index
    %5 = vector.load %arg4[%c0_4, %c0_5] : memref<32x96xbf16, #tpu.memory_space<vmem>>, vector<32x96xbf16>
    %cst = arith.constant dense<0.000000e+00> : vector<16x96xf32>
    %6 = tpu.matmul %4, %5, %cst {dimension_numbers = #tpu.dot_dimension_numbers<[1], [0], [0], [1], [0, 0, 1, 1], [], []>} : vector<16x32xbf16>, vector<32x96xbf16>, vector<16x96xf32> -> vector<16x96xf32>
    %7 = arith.addf %3, %6 : vector<16x96xf32>
    %c0_6 = arith.constant 0 : index
    %c0_7 = arith.constant 0 : index
    %8 = vector.load %arg7[%c0_6, %c0_7] : memref<16x96xf32, #tpu.memory_space<vmem>>, vector<16x96xf32>
    tpu.vector_store %arg7[%c0_6, %c0_7], %7 {strides = array<i32>} : memref<16x96xf32, #tpu.memory_space<vmem>>, vector<16x96xf32>,
    %c0_i32_8 = arith.constant 0 : i32
    %9 = arith.cmpi eq, %arg2, %c0_i32_8 : i32
    %10 = arith.extui %9 : i1 to i32
    %c0_i32_9 = arith.constant 0 : i32
    %11 = arith.cmpi ne, %10, %c0_i32_9 : i32
    scf.if %11 {
      %c0_10 = arith.constant 0 : index
      %c0_11 = arith.constant 0 : index
      %12 = vector.load %arg7[%c0_10, %c0_11] : memref<16x96xf32, #tpu.memory_space<vmem>>, vector<16x96xf32>
      %c0_12 = arith.constant 0 : index
      %c0_13 = arith.constant 0 : index
      %13 = vector.load %arg5[%c0_12, %c0_13] : memref<1x96xf32, #tpu.memory_space<vmem>>, vector<1x96xf32>
      %14 = vector.broadcast %13 : vector<1x96xf32> to vector<16x96xf32>
      %15 = arith.addf %12, %14 : vector<16x96xf32>
      %16 = arith.truncf %15 : vector<16x96xf32> to vector<16x96xbf16>
      %c0_14 = arith.constant 0 : index
      %c0_15 = arith.constant 0 : index
      %17 = vector.load %arg6[%c0_14, %c0_15] : memref<16x96xbf16, #tpu.memory_space<vmem>>, vector<16x96xbf16>
      tpu.vector_store %arg6[%c0_14, %c0_15], %16 {strides = array<i32>} : memref<16x96xbf16, #tpu.memory_space<vmem>>, vector<16x96xbf16>,
    } else {
    }
    return
  }
  func.func @transform_0(%arg0: i32, %arg1: i32, %arg2: i32) -> (i32, i32) {
    %c0_i32 = arith.constant 0 : i32
    return %arg0, %arg2 : i32, i32
  }
  func.func @transform_1(%arg0: i32, %arg1: i32, %arg2: i32) -> (i32, i32) {
    %c0_i32 = arith.constant 0 : i32
    return %arg2, %arg1 : i32, i32
  }
  func.func @transform_2(%arg0: i32, %arg1: i32, %arg2: i32) -> (i32, i32) {
    %c0_i32 = arith.constant 0 : i32
    %c0_i32_0 = arith.constant 0 : i32
    return %c0_i32, %arg1 : i32, i32
  }
  func.func @transform_3(%arg0: i32, %arg1: i32, %arg2: i32) -> (i32, i32) {
    %c0_i32 = arith.constant 0 : i32
    return %arg0, %arg1 : i32, i32
  }
}

module attributes {stable_mosaic.version = 11 : i64} {
  func.func @_flash_attn_kernel(%arg0: i32, %arg1: i32, %arg2: i32, %arg3: i32, %arg4: memref<1x1x8x8xbf16, #tpu.memory_space<vmem>>, %arg5: memref<1x1x8x8xbf16, #tpu.memory_space<vmem>>, %arg6: memref<1x1x8x8xbf16, #tpu.memory_space<vmem>>, %arg7: memref<1x1x8x8xbf16, #tpu.memory_space<vmem>>, %arg8: memref<8x1xf32, #tpu.memory_space<vmem>>, %arg9: memref<8x1xf32, #tpu.memory_space<vmem>>, %arg10: memref<8x8xf32, #tpu.memory_space<vmem>>) attributes {dimension_semantics = [#tpu.dimension_semantics<parallel>, #tpu.dimension_semantics<parallel>, #tpu.dimension_semantics<parallel>, #tpu.dimension_semantics<arbitrary>], iteration_bounds = array<i64: 2, 4, 1, 1>, scalar_prefetch = 0 : i64, scratch_operands = 3 : i64, tpu.core_type = #tpu.core_type<tc>, window_params = [{transform_indices = @transform_0, window_bounds = array<i64: 1, 1, 8, 8>}, {transform_indices = @transform_1, window_bounds = array<i64: 1, 1, 8, 8>}, {transform_indices = @transform_2, window_bounds = array<i64: 1, 1, 8, 8>}, {transform_indices = @transform_3, window_bounds = array<i64: 1, 1, 8, 8>}]} {
    %c0_i32 = arith.constant 0 : i32
    %0 = arith.cmpi eq, %arg3, %c0_i32 : i32
    %1 = arith.extui %0 : i1 to i32
    %c0_i32_0 = arith.constant 0 : i32
    %2 = arith.cmpi ne, %1, %c0_i32_0 : i32
    scf.if %2 {
      %cst = arith.constant 0xFF800000 : f32
      %19 = vector.broadcast %cst : f32 to vector<8x1xf32>
      %c0 = arith.constant 0 : index
      %c0_8 = arith.constant 0 : index
      %20 = vector.load %arg8[%c0, %c0_8] : memref<8x1xf32, #tpu.memory_space<vmem>>, vector<8x1xf32>
      tpu.vector_store %arg8[%c0, %c0_8], %19 {strides = array<i32>} : memref<8x1xf32, #tpu.memory_space<vmem>>, vector<8x1xf32>,
      %cst_9 = arith.constant 0.000000e+00 : f32
      %21 = vector.broadcast %cst_9 : f32 to vector<8x1xf32>
      %c0_10 = arith.constant 0 : index
      %c0_11 = arith.constant 0 : index
      %22 = vector.load %arg9[%c0_10, %c0_11] : memref<8x1xf32, #tpu.memory_space<vmem>>, vector<8x1xf32>
      tpu.vector_store %arg9[%c0_10, %c0_11], %21 {strides = array<i32>} : memref<8x1xf32, #tpu.memory_space<vmem>>, vector<8x1xf32>,
      %cst_12 = arith.constant 0.000000e+00 : f32
      %23 = vector.broadcast %cst_12 : f32 to vector<8x8xf32>
      %c0_13 = arith.constant 0 : index
      %c0_14 = arith.constant 0 : index
      %24 = vector.load %arg10[%c0_13, %c0_14] : memref<8x8xf32, #tpu.memory_space<vmem>>, vector<8x8xf32>
      tpu.vector_store %arg10[%c0_13, %c0_14], %23 {strides = array<i32>} : memref<8x8xf32, #tpu.memory_space<vmem>>, vector<8x8xf32>,
    } else {
    }
    %c8_i32 = arith.constant 8 : i32
    %3 = arith.muli %arg2, %c8_i32 : i32
    %c8_i32_1 = arith.constant 8 : i32
    %4 = arith.muli %arg3, %c8_i32_1 : i32
    %c7_i32 = arith.constant 7 : i32
    %5 = arith.addi %4, %c7_i32 : i32
    %6 = arith.cmpi sle, %5, %3 : i32
    %c7_i32_2 = arith.constant 7 : i32
    %7 = arith.addi %4, %c7_i32_2 : i32
    %8 = arith.cmpi sgt, %7, %3 : i32
    %c7_i32_3 = arith.constant 7 : i32
    %9 = arith.addi %3, %c7_i32_3 : i32
    %10 = arith.cmpi sle, %4, %9 : i32
    %11 = arith.andi %8, %10 : i1
    %12 = arith.extui %6 : i1 to i32
    %c0_i32_4 = arith.constant 0 : i32
    %13 = arith.cmpi ne, %12, %c0_i32_4 : i32
    scf.if %13 {
      %c0 = arith.constant 0 : index
      %c0_8 = arith.constant 0 : index
      %c0_9 = arith.constant 0 : index
      %c0_10 = arith.constant 0 : index
      %19 = vector.load %arg4[%c0, %c0_8, %c0_9, %c0_10] : memref<1x1x8x8xbf16, #tpu.memory_space<vmem>>, vector<1x1x8x8xbf16>
      %20 = vector.shape_cast %19 : vector<1x1x8x8xbf16> to vector<8x8xbf16>
      %c0_11 = arith.constant 0 : index
      %c0_12 = arith.constant 0 : index
      %c0_13 = arith.constant 0 : index
      %c0_14 = arith.constant 0 : index
      %21 = vector.load %arg5[%c0_11, %c0_12, %c0_13, %c0_14] : memref<1x1x8x8xbf16, #tpu.memory_space<vmem>>, vector<1x1x8x8xbf16>
      %22 = vector.shape_cast %21 : vector<1x1x8x8xbf16> to vector<8x8xbf16>
      %c0_15 = arith.constant 0 : index
      %c0_16 = arith.constant 0 : index
      %c0_17 = arith.constant 0 : index
      %c0_18 = arith.constant 0 : index
      %23 = vector.load %arg6[%c0_15, %c0_16, %c0_17, %c0_18] : memref<1x1x8x8xbf16, #tpu.memory_space<vmem>>, vector<1x1x8x8xbf16>
      %24 = vector.shape_cast %23 : vector<1x1x8x8xbf16> to vector<8x8xbf16>
      %cst = arith.constant dense<0.000000e+00> : vector<8x8xf32>
      %25 = tpu.matmul %20, %22, %cst {dimension_numbers = #tpu.dot_dimension_numbers<[1], [1], [0], [0], [0, 0, 1, 0], [], []>} : vector<8x8xbf16>, vector<8x8xbf16>, vector<8x8xf32> -> vector<8x8xf32>
      %cst_19 = arith.constant 0.353553385 : f32
      %26 = vector.broadcast %cst_19 : f32 to vector<8x8xf32>
      %27 = arith.mulf %25, %26 : vector<8x8xf32>
      %c0_20 = arith.constant 0 : index
      %c0_21 = arith.constant 0 : index
      %28 = vector.load %arg8[%c0_20, %c0_21] : memref<8x1xf32, #tpu.memory_space<vmem>>, vector<8x1xf32>
      %cst_22 = arith.constant dense<0xFF800000> : vector<8xf32>
      %29 = vector.multi_reduction <maximumf>, %27, %cst_22 [1] : vector<8x8xf32> to vector<8xf32>
      %30 = vector.shape_cast %29 : vector<8xf32> to vector<8x1xf32>
      %31 = arith.maximumf %28, %30 : vector<8x1xf32>
      %32 = arith.subf %28, %31 : vector<8x1xf32>
      %33 = math.exp %32 : vector<8x1xf32>
      %34 = vector.broadcast %31 : vector<8x1xf32> to vector<8x8xf32>
      %35 = arith.subf %27, %34 : vector<8x8xf32>
      %36 = math.exp %35 : vector<8x8xf32>
      %c0_23 = arith.constant 0 : index
      %c0_24 = arith.constant 0 : index
      %37 = vector.load %arg9[%c0_23, %c0_24] : memref<8x1xf32, #tpu.memory_space<vmem>>, vector<8x1xf32>
      %38 = arith.mulf %33, %37 : vector<8x1xf32>
      %cst_25 = arith.constant dense<0.000000e+00> : vector<8xf32>
      %39 = vector.multi_reduction <add>, %36, %cst_25 [1] : vector<8x8xf32> to vector<8xf32>
      %40 = vector.shape_cast %39 : vector<8xf32> to vector<8x1xf32>
      %41 = arith.addf %38, %40 : vector<8x1xf32>
      %c0_26 = arith.constant 0 : index
      %c0_27 = arith.constant 0 : index
      %42 = vector.load %arg9[%c0_26, %c0_27] : memref<8x1xf32, #tpu.memory_space<vmem>>, vector<8x1xf32>
      tpu.vector_store %arg9[%c0_26, %c0_27], %41 {strides = array<i32>} : memref<8x1xf32, #tpu.memory_space<vmem>>, vector<8x1xf32>,
      %c0_28 = arith.constant 0 : index
      %c0_29 = arith.constant 0 : index
      %43 = vector.load %arg10[%c0_28, %c0_29] : memref<8x8xf32, #tpu.memory_space<vmem>>, vector<8x8xf32>
      %44 = vector.broadcast %33 : vector<8x1xf32> to vector<8x8xf32>
      %45 = arith.mulf %44, %43 : vector<8x8xf32>
      %46 = arith.truncf %36 : vector<8x8xf32> to vector<8x8xbf16>
      %cst_30 = arith.constant dense<0.000000e+00> : vector<8x8xf32>
      %47 = tpu.matmul %46, %24, %cst_30 {dimension_numbers = #tpu.dot_dimension_numbers<[1], [0], [0], [1], [0, 0, 1, 1], [], []>} : vector<8x8xbf16>, vector<8x8xbf16>, vector<8x8xf32> -> vector<8x8xf32>
      %48 = arith.addf %45, %47 : vector<8x8xf32>
      %c0_31 = arith.constant 0 : index
      %c0_32 = arith.constant 0 : index
      %49 = vector.load %arg10[%c0_31, %c0_32] : memref<8x8xf32, #tpu.memory_space<vmem>>, vector<8x8xf32>
      tpu.vector_store %arg10[%c0_31, %c0_32], %48 {strides = array<i32>} : memref<8x8xf32, #tpu.memory_space<vmem>>, vector<8x8xf32>,
      %c0_33 = arith.constant 0 : index
      %c0_34 = arith.constant 0 : index
      %50 = vector.load %arg8[%c0_33, %c0_34] : memref<8x1xf32, #tpu.memory_space<vmem>>, vector<8x1xf32>
      tpu.vector_store %arg8[%c0_33, %c0_34], %31 {strides = array<i32>} : memref<8x1xf32, #tpu.memory_space<vmem>>, vector<8x1xf32>,
    } else {
    }
    %14 = arith.extui %11 : i1 to i32
    %c0_i32_5 = arith.constant 0 : i32
    %15 = arith.cmpi ne, %14, %c0_i32_5 : i32
    scf.if %15 {
      %c0 = arith.constant 0 : index
      %c0_8 = arith.constant 0 : index
      %c0_9 = arith.constant 0 : index
      %c0_10 = arith.constant 0 : index
      %19 = vector.load %arg4[%c0, %c0_8, %c0_9, %c0_10] : memref<1x1x8x8xbf16, #tpu.memory_space<vmem>>, vector<1x1x8x8xbf16>
      %20 = vector.shape_cast %19 : vector<1x1x8x8xbf16> to vector<8x8xbf16>
      %c0_11 = arith.constant 0 : index
      %c0_12 = arith.constant 0 : index
      %c0_13 = arith.constant 0 : index
      %c0_14 = arith.constant 0 : index
      %21 = vector.load %arg5[%c0_11, %c0_12, %c0_13, %c0_14] : memref<1x1x8x8xbf16, #tpu.memory_space<vmem>>, vector<1x1x8x8xbf16>
      %22 = vector.shape_cast %21 : vector<1x1x8x8xbf16> to vector<8x8xbf16>
      %c0_15 = arith.constant 0 : index
      %c0_16 = arith.constant 0 : index
      %c0_17 = arith.constant 0 : index
      %c0_18 = arith.constant 0 : index
      %23 = vector.load %arg6[%c0_15, %c0_16, %c0_17, %c0_18] : memref<1x1x8x8xbf16, #tpu.memory_space<vmem>>, vector<1x1x8x8xbf16>
      %24 = vector.shape_cast %23 : vector<1x1x8x8xbf16> to vector<8x8xbf16>
      %cst = arith.constant dense<0.000000e+00> : vector<8x8xf32>
      %25 = tpu.matmul %20, %22, %cst {dimension_numbers = #tpu.dot_dimension_numbers<[1], [1], [0], [0], [0, 0, 1, 0], [], []>} : vector<8x8xbf16>, vector<8x8xbf16>, vector<8x8xf32> -> vector<8x8xf32>
      %cst_19 = arith.constant 0.353553385 : f32
      %26 = vector.broadcast %cst_19 : f32 to vector<8x8xf32>
      %27 = arith.mulf %25, %26 : vector<8x8xf32>
      %28 = tpu.iota {dimensions = array<i32: 0>} : vector<8x8xi32>
      %29 = vector.broadcast %3 : i32 to vector<8x8xi32>
      %30 = arith.addi %29, %28 : vector<8x8xi32>
      %31 = tpu.iota {dimensions = array<i32: 1>} : vector<8x8xi32>
      %32 = vector.broadcast %4 : i32 to vector<8x8xi32>
      %33 = arith.addi %32, %31 : vector<8x8xi32>
      %34 = arith.cmpi sle, %33, %30 : vector<8x8xi32>
      %cst_20 = arith.constant -1.000000e+30 : f32
      %35 = vector.broadcast %cst_20 : f32 to vector<8x8xf32>
      %36 = arith.select %34, %27, %35 : vector<8x8xi1>, vector<8x8xf32>
      %c0_21 = arith.constant 0 : index
      %c0_22 = arith.constant 0 : index
      %37 = vector.load %arg8[%c0_21, %c0_22] : memref<8x1xf32, #tpu.memory_space<vmem>>, vector<8x1xf32>
      %cst_23 = arith.constant dense<0xFF800000> : vector<8xf32>
      %38 = vector.multi_reduction <maximumf>, %36, %cst_23 [1] : vector<8x8xf32> to vector<8xf32>
      %39 = vector.shape_cast %38 : vector<8xf32> to vector<8x1xf32>
      %40 = arith.maximumf %37, %39 : vector<8x1xf32>
      %41 = arith.subf %37, %40 : vector<8x1xf32>
      %42 = math.exp %41 : vector<8x1xf32>
      %43 = vector.broadcast %40 : vector<8x1xf32> to vector<8x8xf32>
      %44 = arith.subf %36, %43 : vector<8x8xf32>
      %45 = math.exp %44 : vector<8x8xf32>
      %c0_24 = arith.constant 0 : index
      %c0_25 = arith.constant 0 : index
      %46 = vector.load %arg9[%c0_24, %c0_25] : memref<8x1xf32, #tpu.memory_space<vmem>>, vector<8x1xf32>
      %47 = arith.mulf %42, %46 : vector<8x1xf32>
      %cst_26 = arith.constant dense<0.000000e+00> : vector<8xf32>
      %48 = vector.multi_reduction <add>, %45, %cst_26 [1] : vector<8x8xf32> to vector<8xf32>
      %49 = vector.shape_cast %48 : vector<8xf32> to vector<8x1xf32>
      %50 = arith.addf %47, %49 : vector<8x1xf32>
      %c0_27 = arith.constant 0 : index
      %c0_28 = arith.constant 0 : index
      %51 = vector.load %arg9[%c0_27, %c0_28] : memref<8x1xf32, #tpu.memory_space<vmem>>, vector<8x1xf32>
      tpu.vector_store %arg9[%c0_27, %c0_28], %50 {strides = array<i32>} : memref<8x1xf32, #tpu.memory_space<vmem>>, vector<8x1xf32>,
      %c0_29 = arith.constant 0 : index
      %c0_30 = arith.constant 0 : index
      %52 = vector.load %arg10[%c0_29, %c0_30] : memref<8x8xf32, #tpu.memory_space<vmem>>, vector<8x8xf32>
      %53 = vector.broadcast %42 : vector<8x1xf32> to vector<8x8xf32>
      %54 = arith.mulf %53, %52 : vector<8x8xf32>
      %55 = arith.truncf %45 : vector<8x8xf32> to vector<8x8xbf16>
      %cst_31 = arith.constant dense<0.000000e+00> : vector<8x8xf32>
      %56 = tpu.matmul %55, %24, %cst_31 {dimension_numbers = #tpu.dot_dimension_numbers<[1], [0], [0], [1], [0, 0, 1, 1], [], []>} : vector<8x8xbf16>, vector<8x8xbf16>, vector<8x8xf32> -> vector<8x8xf32>
      %57 = arith.addf %54, %56 : vector<8x8xf32>
      %c0_32 = arith.constant 0 : index
      %c0_33 = arith.constant 0 : index
      %58 = vector.load %arg10[%c0_32, %c0_33] : memref<8x8xf32, #tpu.memory_space<vmem>>, vector<8x8xf32>
      tpu.vector_store %arg10[%c0_32, %c0_33], %57 {strides = array<i32>} : memref<8x8xf32, #tpu.memory_space<vmem>>, vector<8x8xf32>,
      %c0_34 = arith.constant 0 : index
      %c0_35 = arith.constant 0 : index
      %59 = vector.load %arg8[%c0_34, %c0_35] : memref<8x1xf32, #tpu.memory_space<vmem>>, vector<8x1xf32>
      tpu.vector_store %arg8[%c0_34, %c0_35], %40 {strides = array<i32>} : memref<8x1xf32, #tpu.memory_space<vmem>>, vector<8x1xf32>,
    } else {
    }
    %c0_i32_6 = arith.constant 0 : i32
    %16 = arith.cmpi eq, %arg3, %c0_i32_6 : i32
    %17 = arith.extui %16 : i1 to i32
    %c0_i32_7 = arith.constant 0 : i32
    %18 = arith.cmpi ne, %17, %c0_i32_7 : i32
    scf.if %18 {
      %c0 = arith.constant 0 : index
      %c0_8 = arith.constant 0 : index
      %19 = vector.load %arg10[%c0, %c0_8] : memref<8x8xf32, #tpu.memory_space<vmem>>, vector<8x8xf32>
      %c0_9 = arith.constant 0 : index
      %c0_10 = arith.constant 0 : index
      %20 = vector.load %arg9[%c0_9, %c0_10] : memref<8x1xf32, #tpu.memory_space<vmem>>, vector<8x1xf32>
      %21 = tpu.reciprocal %20 {approx = true} : vector<8x1xf32> -> vector<8x1xf32>
      %22 = vector.broadcast %21 : vector<8x1xf32> to vector<8x8xf32>
      %23 = arith.mulf %19, %22 : vector<8x8xf32>
      %24 = arith.truncf %23 : vector<8x8xf32> to vector<8x8xbf16>
      %c0_11 = arith.constant 0 : index
      %c0_12 = arith.constant 0 : index
      %c0_13 = arith.constant 0 : index
      %c0_14 = arith.constant 0 : index
      %25 = vector.load %arg7[%c0_11, %c0_12, %c0_13, %c0_14] : memref<1x1x8x8xbf16, #tpu.memory_space<vmem>>, vector<1x1x8x8xbf16>
      %26 = vector.shape_cast %25 : vector<1x1x8x8xbf16> to vector<8x8xbf16>
      %27 = vector.shape_cast %24 : vector<8x8xbf16> to vector<1x1x8x8xbf16>
      tpu.vector_store %arg7[%c0_11, %c0_12, %c0_13, %c0_14], %27 {strides = array<i32>} : memref<1x1x8x8xbf16, #tpu.memory_space<vmem>>, vector<1x1x8x8xbf16>,
    } else {
    }
    return
  }
  func.func @transform_0(%arg0: i32, %arg1: i32, %arg2: i32, %arg3: i32) -> (i32, i32, i32, i32) {
    %c0_i32 = arith.constant 0 : i32
    %c0_i32_0 = arith.constant 0 : i32
    return %arg0, %arg1, %arg2, %c0_i32 : i32, i32, i32, i32
  }
  func.func @transform_1(%arg0: i32, %arg1: i32, %arg2: i32, %arg3: i32) -> (i32, i32, i32, i32) {
    %c0_i32 = arith.constant 0 : i32
    %c0_i32_0 = arith.constant 0 : i32
    return %arg0, %arg1, %arg3, %c0_i32 : i32, i32, i32, i32
  }
  func.func @transform_2(%arg0: i32, %arg1: i32, %arg2: i32, %arg3: i32) -> (i32, i32, i32, i32) {
    %c0_i32 = arith.constant 0 : i32
    %c0_i32_0 = arith.constant 0 : i32
    return %arg0, %arg1, %arg3, %c0_i32 : i32, i32, i32, i32
  }
  func.func @transform_3(%arg0: i32, %arg1: i32, %arg2: i32, %arg3: i32) -> (i32, i32, i32, i32) {
    %c0_i32 = arith.constant 0 : i32
    %c0_i32_0 = arith.constant 0 : i32
    return %arg0, %arg1, %arg2, %c0_i32 : i32, i32, i32, i32
  }
}

module attributes {stable_mosaic.version = 11 : i64} {
  func.func @_linear_kernel(%arg0: i32, %arg1: i32, %arg2: i32, %arg3: memref<16x32xbf16, #tpu.memory_space<vmem>>, %arg4: memref<32x32xbf16, #tpu.memory_space<vmem>>, %arg5: memref<1x32xf32, #tpu.memory_space<vmem>>, %arg6: memref<16x32xf32, #tpu.memory_space<vmem>>, %arg7: memref<16x32xf32, #tpu.memory_space<vmem>>) attributes {dimension_semantics = [#tpu.dimension_semantics<parallel>, #tpu.dimension_semantics<parallel>, #tpu.dimension_semantics<arbitrary>], iteration_bounds = array<i64: 1, 1, 1>, scalar_prefetch = 0 : i64, scratch_operands = 1 : i64, tpu.core_type = #tpu.core_type<tc>, window_params = [{transform_indices = @transform_0, window_bounds = array<i64: 16, 32>}, {transform_indices = @transform_1, window_bounds = array<i64: 32, 32>}, {transform_indices = @transform_2, window_bounds = array<i64: 1, 32>}, {transform_indices = @transform_3, window_bounds = array<i64: 16, 32>}]} {
    %c0_i32 = arith.constant 0 : i32
    %0 = arith.cmpi eq, %arg2, %c0_i32 : i32
    %1 = arith.extui %0 : i1 to i32
    %c0_i32_0 = arith.constant 0 : i32
    %2 = arith.cmpi ne, %1, %c0_i32_0 : i32
    scf.if %2 {
      %cst_10 = arith.constant 0.000000e+00 : f32
      %12 = vector.broadcast %cst_10 : f32 to vector<16x32xf32>
      %c0_11 = arith.constant 0 : index
      %c0_12 = arith.constant 0 : index
      %13 = vector.load %arg7[%c0_11, %c0_12] : memref<16x32xf32, #tpu.memory_space<vmem>>, vector<16x32xf32>
      tpu.vector_store %arg7[%c0_11, %c0_12], %12 {strides = array<i32>} : memref<16x32xf32, #tpu.memory_space<vmem>>, vector<16x32xf32>,
    } else {
    }
    %c0 = arith.constant 0 : index
    %c0_1 = arith.constant 0 : index
    %3 = vector.load %arg7[%c0, %c0_1] : memref<16x32xf32, #tpu.memory_space<vmem>>, vector<16x32xf32>
    %c0_2 = arith.constant 0 : index
    %c0_3 = arith.constant 0 : index
    %4 = vector.load %arg3[%c0_2, %c0_3] : memref<16x32xbf16, #tpu.memory_space<vmem>>, vector<16x32xbf16>
    %c0_4 = arith.constant 0 : index
    %c0_5 = arith.constant 0 : index
    %5 = vector.load %arg4[%c0_4, %c0_5] : memref<32x32xbf16, #tpu.memory_space<vmem>>, vector<32x32xbf16>
    %cst = arith.constant dense<0.000000e+00> : vector<16x32xf32>
    %6 = tpu.matmul %4, %5, %cst {dimension_numbers = #tpu.dot_dimension_numbers<[1], [0], [0], [1], [0, 0, 1, 1], [], []>} : vector<16x32xbf16>, vector<32x32xbf16>, vector<16x32xf32> -> vector<16x32xf32>
    %7 = arith.addf %3, %6 : vector<16x32xf32>
    %c0_6 = arith.constant 0 : index
    %c0_7 = arith.constant 0 : index
    %8 = vector.load %arg7[%c0_6, %c0_7] : memref<16x32xf32, #tpu.memory_space<vmem>>, vector<16x32xf32>
    tpu.vector_store %arg7[%c0_6, %c0_7], %7 {strides = array<i32>} : memref<16x32xf32, #tpu.memory_space<vmem>>, vector<16x32xf32>,
    %c0_i32_8 = arith.constant 0 : i32
    %9 = arith.cmpi eq, %arg2, %c0_i32_8 : i32
    %10 = arith.extui %9 : i1 to i32
    %c0_i32_9 = arith.constant 0 : i32
    %11 = arith.cmpi ne, %10, %c0_i32_9 : i32
    scf.if %11 {
      %c0_10 = arith.constant 0 : index
      %c0_11 = arith.constant 0 : index
      %12 = vector.load %arg7[%c0_10, %c0_11] : memref<16x32xf32, #tpu.memory_space<vmem>>, vector<16x32xf32>
      %c0_12 = arith.constant 0 : index
      %c0_13 = arith.constant 0 : index
      %13 = vector.load %arg5[%c0_12, %c0_13] : memref<1x32xf32, #tpu.memory_space<vmem>>, vector<1x32xf32>
      %14 = vector.broadcast %13 : vector<1x32xf32> to vector<16x32xf32>
      %15 = arith.addf %12, %14 : vector<16x32xf32>
      %c0_14 = arith.constant 0 : index
      %c0_15 = arith.constant 0 : index
      %16 = vector.load %arg6[%c0_14, %c0_15] : memref<16x32xf32, #tpu.memory_space<vmem>>, vector<16x32xf32>
      tpu.vector_store %arg6[%c0_14, %c0_15], %15 {strides = array<i32>} : memref<16x32xf32, #tpu.memory_space<vmem>>, vector<16x32xf32>,
    } else {
    }
    return
  }
  func.func @transform_0(%arg0: i32, %arg1: i32, %arg2: i32) -> (i32, i32) {
    %c0_i32 = arith.constant 0 : i32
    return %arg0, %arg2 : i32, i32
  }
  func.func @transform_1(%arg0: i32, %arg1: i32, %arg2: i32) -> (i32, i32) {
    %c0_i32 = arith.constant 0 : i32
    return %arg2, %arg1 : i32, i32
  }
  func.func @transform_2(%arg0: i32, %arg1: i32, %arg2: i32) -> (i32, i32) {
    %c0_i32 = arith.constant 0 : i32
    %c0_i32_0 = arith.constant 0 : i32
    return %c0_i32, %arg1 : i32, i32
  }
  func.func @transform_3(%arg0: i32, %arg1: i32, %arg2: i32) -> (i32, i32) {
    %c0_i32 = arith.constant 0 : i32
    return %arg0, %arg1 : i32, i32
  }
}

</mosaic_0001>

<llo_original>
// kernel: causal_self_attention.3
$region0: #{causal_self_attention.3}
  #allocation0 [shape = 'u32[]', space=smem, size = 0x4, offset = 0x4, fixed_abs, tag = 'smem constant byte address 0x4 - core index']
  #allocation1 [shape = 'u32[144,128]{1,0:T(1,128)}', space=vmem, size = 0x12000, scoped, tag = 'internal scratch']
  #allocation2 [shape = 'f32[16,96]{1,0:T(8,128)}', space=vmem, size = 0x2000, scoped, tag = 'scratch operand']
  %s0 = inlined_call_operand.vmem [shape: bf16[16,32], index: 0, kind: input, shape index: {}]
  %s1 = inlined_call_operand.vmem [shape: bf16[32,96], index: 1, kind: input, shape index: {}]
  %s2 = inlined_call_operand.vmem [shape: f32[1,96], index: 2, kind: input, shape index: {}]
  %s3 = inlined_call_operand.vmem [shape: bf16[16,96], index: 3, kind: output, shape index: {}]
  %s4 = sld [smem:[#allocation0]]
  $region30: #{causal_self_attention.3} parent=0
    _
  %s6 = ssub.s32 1, %s4
  %s7 = scalar_select 0, %s6, %s4
  // Predicated region
  $region2: #{causal_self_attention.3} parent=0 // pred_check
    _
  $region3: #{causal_self_attention.3} parent=0 // pred_check_branch
    %9 = sbr.rel (0) target = $region5
  $region4: #{causal_self_attention.3} parent=0 // pred_region
    _
  $region5: #{causal_self_attention.3} parent=0 // pred_fallthru
    _
  // Predicated region
  $region6: #{causal_self_attention.3} parent=0 // pred_check
    _
  $region7: #{causal_self_attention.3} parent=0 // pred_check_branch
    %11 = sbr.rel (0) target = $region9
  $region8: #{causal_self_attention.3} parent=0 // pred_region
    _
  $region9: #{causal_self_attention.3} parent=0 // pred_fallthru
    _
  // Predicated region
  $region10: #{causal_self_attention.3} parent=0 // pred_check
    _
  $region11: #{causal_self_attention.3} parent=0 // pred_check_branch
    %13 = sbr.rel (0) target = $region13
  $region12: #{causal_self_attention.3} parent=0 // pred_region
    _
  $region13: #{causal_self_attention.3} parent=0 // pred_fallthru
    _
  %p15 = scmp.eq.s32.totalorder 0, 0
  // Predicated region
  $region14: #{causal_self_attention.3} parent=0 // pred_check
    %p16 = pneg %p15
  $region15: #{causal_self_attention.3} parent=0 // pred_check_branch
    %18 = sbr.rel (%p16) target = $region17
  $region16: #{causal_self_attention.3} parent=0 // pred_region
    %vm19 = vcmask 785408
    %20 = vst.msk [vmem:[#allocation2] sm:$0xff] %vm19, 0.0
    %21 = vst.msk [vmem:[#allocation2 + $0x8] sm:$0xff] %vm19, 0.0
  $region17: #{causal_self_attention.3} parent=0 // pred_fallthru
    _
  %v22 = vld [vmem:[#allocation2] sm:$0xff]
  %v23 = vld [vmem:[#allocation2 + $0x8] sm:$0xff]
  %v24 = vld [vmem:[%s0] sm:$0xf]
  %v25 = vld [vmem:[%s0 + $0x4] sm:$0xf]
  %v26 = vld [vmem:[%s1] sm:$0xf]
  %v27 = vld [vmem:[%s1 + $0x4] sm:$0xf]
  %v28 = vld [vmem:[%s1 + $0x8] sm:$0xf]
  %v29 = vld [vmem:[%s1 + $0xc] sm:$0xf]
  %v32 = vunpack.c.l.b16 %v24
  %v33 = vunpack.c.l.b16 %v25
  %v34 = vpack.c.b16 %v33, %v32
  %v39 = vunpack.c.l.b16 %v26
  %v40 = vunpack.c.l.b16 %v27
  %v41 = vunpack.c.l.b16 %v28
  %v42 = vunpack.c.l.b16 %v29
  %v43 = vpack.c.b16 %v40, %v39
  %v44 = vpack.c.b16 %v42, %v41
  %vm47 = vcmask 261120
  %v49 = vsel %vm47, %v34, 0
  %51 = vmatprep.subr.bf16.mxu0 0
  %52 = vmatpush1.bf16.msra.mxu0 0
  %53 = vmatprep.subr.bf16.mxu0 0
  %54 = vmatpush1.bf16.msra.mxu0 0
  %55 = vmatprep.subr.bf16.mxu0 0
  %56 = vmatpush1.bf16.msra.mxu0 0
  %57 = vmatprep.subr.bf16.mxu0 0
  %58 = vmatpush1.bf16.msra.mxu0 0
  %59 = vmatprep.subr.bf16.mxu0 0
  %60 = vmatpush1.bf16.msra.mxu0 0
  %61 = vmatprep.subr.bf16.mxu0 0
  %62 = vmatpush1.bf16.msra.mxu0 0
  %63 = vmatprep.subr.bf16.mxu0 0
  %64 = vmatpush1.bf16.msra.mxu0 %v44
  %65 = vmatprep.subr.bf16.mxu0 0
  %66 = vmatpush1.bf16.msra.mxu0 %v43
  %67 = vmatprep.subr.bf16.mxu0 0
  %68 = vmatpush2.bf16.msra.mxu0 0
  %69 = vmatprep.subr.bf16.mxu0 0
  %70 = vmatpush2.bf16.msra.mxu0 0
  %71 = vmatprep.subr.bf16.mxu0 0
  %72 = vmatpush2.bf16.msra.mxu0 0
  %73 = vmatprep.subr.bf16.mxu0 0
  %74 = vmatpush2.bf16.msra.mxu0 0
  %75 = vmatprep.subr.bf16.mxu0 0
  %76 = vmatpush2.bf16.msra.mxu0 0
  %77 = vmatprep.subr.bf16.mxu0 0
  %78 = vmatpush2.bf16.msra.mxu0 0
  %79 = vmatprep.subr.bf16.mxu0 0
  %80 = vmatpush2.bf16.msra.mxu0 0
  %81 = vmatprep.subr.bf16.mxu0 0
  %82 = vmatpush2.bf16.msra.mxu0 0
  %83 = vmatprep.mubr.bf16.mxu0 0
  %84 = vmatmul.mubr.bf16.gmra.mxu0 %v49
  %v85 = vpop.f32.mrf.mxu0
  %v86 = vadd.f32 0.0, %v85
  %v87 = vpop.f32.mrf.mxu0
  %v88 = vpop.f32.mrf.mxu0
  %v89 = vadd.f32 0.0, %v88
  %v90 = vpop.f32.mrf.mxu0
  %91 = vdwg.mxu0
  %v92 = vadd.f32 %v22, %v86
  %v93 = vadd.f32 %v23, %v89
  %vm94 = vcmask 785408
  %95 = vst.msk [vmem:[#allocation2] sm:$0xff] %vm94, %v92
  %96 = vst.msk [vmem:[#allocation2 + $0x8] sm:$0xff] %vm94, %v93
  // Predicated region
  $region18: #{causal_self_attention.3} parent=0 // pred_check
    %p97 = pneg %p15
  $region19: #{causal_self_attention.3} parent=0 // pred_check_branch
    %99 = sbr.rel (%p97) target = $region21
  $region20: #{causal_self_attention.3} parent=0 // pred_region
    %v100 = vld [vmem:[#allocation2] sm:$0xff]
    %v101 = vld [vmem:[#allocation2 + $0x8] sm:$0xff]
    %v102 = vld [vmem:[%s2] sm:$0x1]
    %v104 = vlaneseq
    %v105 = vshrl.u32 %v104, 7
    %v106 = vsub.s32 0, %v105
    %v107 = vrot.slane %v102, %v106
    %v109 = vadd.f32 %v100, %v107
    %v110 = vadd.f32 %v101, %v107
    %v111 = vpack.c.bf16 %v110, %v109
    %v113 = vunpack.c.l.b16 %v111
    %v114 = vunpack.c.h.b16 %v111
    %v115 = vpack.c.b16 %v113, %v113
    %v116 = vpack.c.b16 %v114, %v114
    %vm119 = vcmask 781312
    %120 = vst.msk [vmem:[%s3] sm:$0xf] %vm119, %v115
    %121 = vst.msk [vmem:[%s3 + $0x4] sm:$0xf] %vm119, %v116
  $region21: #{causal_self_attention.3} parent=0 // pred_fallthru
    _
  // Predicated region
  $region22: #{causal_self_attention.3} parent=0 // pred_check
    _
  $region23: #{causal_self_attention.3} parent=0 // pred_check_branch
    %123 = sbr.rel (0) target = $region25
  $region24: #{causal_self_attention.3} parent=0 // pred_region
    _
  $region25: #{causal_self_attention.3} parent=0 // pred_fallthru
    _
  // Predicated region
  $region26: #{causal_self_attention.3} parent=0 // pred_check
    _
  $region27: #{causal_self_attention.3} parent=0 // pred_check_branch
    %125 = sbr.rel (0) target = $region29
  $region28: #{causal_self_attention.3} parent=0 // pred_region
    _
  $region29: #{causal_self_attention.3} parent=0 // pred_fallthru
    _

// kernel: causal_self_attention.5
$region0: #{causal_self_attention.5}
  #allocation0 [shape = 'u32[]', space=smem, size = 0x4, offset = 0x4, fixed_abs, tag = 'smem constant byte address 0x4 - core index']
  #allocation1 [shape = 'u32[144,128]{1,0:T(1,128)}', space=vmem, size = 0x12000, scoped, tag = 'internal scratch']
  #allocation2 [shape = 'f32[16,32]{1,0:T(8,128)}', space=vmem, size = 0x2000, scoped, tag = 'scratch operand']
  %s0 = inlined_call_operand.vmem [shape: bf16[16,32], index: 0, kind: input, shape index: {}]
  %s1 = inlined_call_operand.vmem [shape: bf16[32,32], index: 1, kind: input, shape index: {}]
  %s2 = inlined_call_operand.vmem [shape: f32[1,32], index: 2, kind: input, shape index: {}]
  %s3 = inlined_call_operand.hbm [shape: f32[16,32], index: 3, kind: output, shape index: {}]
  %s4 = sld [smem:[#allocation0]]
  $region30: #{causal_self_attention.5} parent=0
    _
  %s6 = ssub.s32 1, %s4
  %s7 = scalar_select 0, %s6, %s4
  $region1: #{causal_self_attention.5} parent=0
    #allocation3 [shape = 'u8[8192]{0}', space=vmem, size = 0x2000, scoped, tag = 'output window, operand 0, single buffered']
    #allocation4 [shape = 's32[1]{0}', space=sflag, size = 0x4, scoped, tag = 'scoped memory for causal_self_attention.5']
    %8 = vsyncpa [#allocation4], 0
    // Predicated region
    $region2: #{causal_self_attention.5} parent=1 // pred_check
      _
    $region3: #{causal_self_attention.5} parent=1 // pred_check_branch
      %10 = sbr.rel (0) target = $region5
    $region4: #{causal_self_attention.5} parent=1 // pred_region
      _
    $region5: #{causal_self_attention.5} parent=1 // pred_fallthru
      _
    // Predicated region
    $region6: #{causal_self_attention.5} parent=1 // pred_check
      _
    $region7: #{causal_self_attention.5} parent=1 // pred_check_branch
      %12 = sbr.rel (0) target = $region9
    $region8: #{causal_self_attention.5} parent=1 // pred_region
      _
    $region9: #{causal_self_attention.5} parent=1 // pred_fallthru
      _
    // Predicated region
    $region10: #{causal_self_attention.5} parent=1 // pred_check
      _
    $region11: #{causal_self_attention.5} parent=1 // pred_check_branch
      %14 = sbr.rel (0) target = $region13
    $region12: #{causal_self_attention.5} parent=1 // pred_region
      _
    $region13: #{causal_self_attention.5} parent=1 // pred_fallthru
      _
    %p16 = scmp.eq.s32.totalorder 0, 0
    // Predicated region
    $region14: #{causal_self_attention.5} parent=1 // pred_check
      %p17 = pneg %p16
    $region15: #{causal_self_attention.5} parent=1 // pred_check_branch
      %19 = sbr.rel (%p17) target = $region17
    $region16: #{causal_self_attention.5} parent=1 // pred_region
      %vm20 = vcmask 261120
      %21 = vst.msk [vmem:[#allocation2] sm:$0xff] %vm20, 0.0
      %22 = vst.msk [vmem:[#allocation2 + $0x8] sm:$0xff] %vm20, 0.0
    $region17: #{causal_self_attention.5} parent=1 // pred_fallthru
      _
    %v23 = vld [vmem:[#allocation2] sm:$0xff]
    %v24 = vld [vmem:[#allocation2 + $0x8] sm:$0xff]
    %v25 = vld [vmem:[%s0] sm:$0xf]
    %v26 = vld [vmem:[%s0 + $0x4] sm:$0xf]
    %v27 = vld [vmem:[%s1] sm:$0xf]
    %v28 = vld [vmem:[%s1 + $0x4] sm:$0xf]
    %v29 = vld [vmem:[%s1 + $0x8] sm:$0xf]
    %v30 = vld [vmem:[%s1 + $0xc] sm:$0xf]
    %v33 = vunpack.c.l.b16 %v25
    %v34 = vunpack.c.l.b16 %v26
    %v35 = vpack.c.b16 %v34, %v33
    %v40 = vunpack.c.l.b16 %v27
    %v41 = vunpack.c.l.b16 %v28
    %v42 = vunpack.c.l.b16 %v29
    %v43 = vunpack.c.l.b16 %v30
    %v44 = vpack.c.b16 %v41, %v40
    %v45 = vpack.c.b16 %v43, %v42
    %vm48 = vcmask 261120
    %v50 = vsel %vm48, %v35, 0
    %52 = vmatprep.subr.bf16.mxu0 0
    %53 = vmatpush1.bf16.msra.mxu0 0
    %54 = vmatprep.subr.bf16.mxu0 0
    %55 = vmatpush1.bf16.msra.mxu0 0
    %56 = vmatprep.subr.bf16.mxu0 0
    %57 = vmatpush1.bf16.msra.mxu0 0
    %58 = vmatprep.subr.bf16.mxu0 0
    %59 = vmatpush1.bf16.msra.mxu0 0
    %60 = vmatprep.subr.bf16.mxu0 0
    %61 = vmatpush1.bf16.msra.mxu0 0
    %62 = vmatprep.subr.bf16.mxu0 0
    %63 = vmatpush1.bf16.msra.mxu0 0
    %64 = vmatprep.subr.bf16.mxu0 0
    %65 = vmatpush1.bf16.msra.mxu0 %v45
    %66 = vmatprep.subr.bf16.mxu0 0
    %67 = vmatpush1.bf16.msra.mxu0 %v44
    %68 = vmatprep.subr.bf16.mxu0 0
    %69 = vmatpush2.bf16.msra.mxu0 0
    %70 = vmatprep.subr.bf16.mxu0 0
    %71 = vmatpush2.bf16.msra.mxu0 0
    %72 = vmatprep.subr.bf16.mxu0 0
    %73 = vmatpush2.bf16.msra.mxu0 0
    %74 = vmatprep.subr.bf16.mxu0 0
    %75 = vmatpush2.bf16.msra.mxu0 0
    %76 = vmatprep.subr.bf16.mxu0 0
    %77 = vmatpush2.bf16.msra.mxu0 0
    %78 = vmatprep.subr.bf16.mxu0 0
    %79 = vmatpush2.bf16.msra.mxu0 0
    %80 = vmatprep.subr.bf16.mxu0 0
    %81 = vmatpush2.bf16.msra.mxu0 0
    %82 = vmatprep.subr.bf16.mxu0 0
    %83 = vmatpush2.bf16.msra.mxu0 0
    %84 = vmatprep.mubr.bf16.mxu0 0
    %85 = vmatmul.mubr.bf16.gmra.mxu0 %v50
    %v86 = vpop.f32.mrf.mxu0
    %v87 = vadd.f32 0.0, %v86
    %v88 = vpop.f32.mrf.mxu0
    %v89 = vpop.f32.mrf.mxu0
    %v90 = vadd.f32 0.0, %v89
    %v91 = vpop.f32.mrf.mxu0
    %92 = vdwg.mxu0
    %v93 = vadd.f32 %v23, %v87
    %v94 = vadd.f32 %v24, %v90
    %95 = vst.msk [vmem:[#allocation2] sm:$0xff] %vm48, %v93
    %96 = vst.msk [vmem:[#allocation2 + $0x8] sm:$0xff] %vm48, %v94
    // Predicated region
    $region18: #{causal_self_attention.5} parent=1 // pred_check
      %p97 = pneg %p16
    $region19: #{causal_self_attention.5} parent=1 // pred_check_branch
      %99 = sbr.rel (%p97) target = $region21
    $region20: #{causal_self_attention.5} parent=1 // pred_region
      %v100 = vld [vmem:[#allocation2] sm:$0xff]
      %v101 = vld [vmem:[#allocation2 + $0x8] sm:$0xff]
      %v102 = vld [vmem:[%s2] sm:$0x1]
      %v104 = vlaneseq
      %v105 = vshrl.u32 %v104, 7
      %v106 = vsub.s32 0, %v105
      %v107 = vrot.slane %v102, %v106
      %v109 = vadd.f32 %v100, %v107
      %v110 = vadd.f32 %v101, %v107
      %111 = vst.msk [vmem:[#allocation3] sm:$0xff] %vm48, %v109
      %112 = vst.msk [vmem:[#allocation3 + $0x8] sm:$0xff] %vm48, %v110
    $region21: #{causal_self_attention.5} parent=1 // pred_fallthru
      _
    // Predicated region
    $region22: #{causal_self_attention.5} parent=1 // pred_check
      _
    $region23: #{causal_self_attention.5} parent=1 // pred_check_branch
      %114 = sbr.rel (0) target = $region25
    $region24: #{causal_self_attention.5} parent=1 // pred_region
      %s116 = ssub.s32 256, 256
      %117 = vsyncadd [#allocation4], %s116
      %s118 = sshll.u32 [#allocation3], 4
      %s119 = int_to_ptr.vmem [resolvable:$true] %s118
      %124 = dma.vmem_to_hbm [thread:$0]  %s119, 256, %s3, [#allocation4], 128, 128, 8
    $region25: #{causal_self_attention.5} parent=1 // pred_fallthru
      _
    // Predicated region
    $region26: #{causal_self_attention.5} parent=1 // pred_check
      _
    $region27: #{causal_self_attention.5} parent=1 // pred_check_branch
      %126 = sbr.rel (0) target = $region29
    $region28: #{causal_self_attention.5} parent=1 // pred_region
      %127 = dma.done [#allocation4], 256
    $region29: #{causal_self_attention.5} parent=1 // pred_fallthru
      _
    %128 = vsyncpa [#allocation4], 1

// kernel: causal_self_attention.4
$region0: #{causal_self_attention.4}
  #allocation0 [shape = 'u32[]', space=smem, size = 0x4, offset = 0x4, fixed_abs, tag = 'smem constant byte address 0x4 - core index']
  #allocation1 [shape = 'u32[144,128]{1,0:T(1,128)}', space=vmem, size = 0x12000, scoped, tag = 'internal scratch']
  #allocation2 [shape = 'f32[8,1]{1,0:T(8,128)}', space=vmem, size = 0x1000, scoped, tag = 'scratch operand']
  #allocation3 [shape = 'f32[8,1]{1,0:T(8,128)}', space=vmem, size = 0x1000, scoped, tag = 'scratch operand']
  #allocation4 [shape = 'f32[8,8]{1,0:T(8,128)}', space=vmem, size = 0x1000, scoped, tag = 'scratch operand']
  %s0 = inlined_call_operand.vmem [shape: bf16[2,4,8,8], index: 0, kind: input, shape index: {}]
  %s1 = inlined_call_operand.vmem [shape: bf16[2,4,8,8], index: 1, kind: input, shape index: {}]
  %s2 = inlined_call_operand.vmem [shape: bf16[2,4,8,8], index: 2, kind: input, shape index: {}]
  %s3 = inlined_call_operand.vmem [shape: bf16[2,4,8,8], index: 3, kind: output, shape index: {}]
  %s4 = sld [smem:[#allocation0]]
  $region61: #{causal_self_attention.4} parent=0
    _
  %s6 = ssub.s32 1, %s4
  %s7 = scalar_select 0, %s6, %s4
  loop: start=0, step=1, limit=10
  $region2: #{causal_self_attention.4} parent=0 // loop_pre_header
    _
  $region3: #{causal_self_attention.4} parent=0 // loop_header
    %s9 = sphi 0, %s13
    %p10 = scmp.ge.s32.totalorder %s9, 10
    %s16 = sphi 0, %s42
    %s17 = sphi 0, %s38
    %s18 = sphi 0, %s34
    %s19 = sphi 0, %s30
    %s20 = sphi 0, %s16
    %s21 = sphi 0, %s17
    %s22 = sphi 0, %s18
    %s23 = sphi 0, %s19
    %s24 = sphi 0, %s20
    %s25 = sphi 0, %s21
    %s26 = sphi 0, %s22
    %s27 = sphi 0, %s23
    %s49 = sphi 0, %s51
    %s52 = sphi 0, %s49
    %s53 = sphi 0, %s52
    %s69 = sphi 0, %s53
    %s79 = sphi 0, %s81
    %s82 = sphi 0, %s79
    %s83 = sphi 0, %s82
    %s99 = sphi 0, %s83
    %s109 = sphi 0, %s111
    %s112 = sphi 0, %s109
    %s113 = sphi 0, %s112
    %s129 = sphi 0, %s113
    %s139 = sphi 0, %s141
    %s142 = sphi 0, %s139
    %s143 = sphi 0, %s142
    %s159 = sphi 0, %s143
  $region4: #{causal_self_attention.4} parent=0 // loop_header_branch
    %12 = sbr.rel (%p10) target = $region8
  $region5: #{causal_self_attention.4} parent=0 // loop_body
    %s14 = ssub.s32 %s9, 1
    %s15 = ssub.s32 %s9, 2
    %s28 = sadd.s32 1, %s19
    %p29 = scmp.ge.s32.totalorder %s28, 1
    %s30 = scalar_select %p29, 0, %s28
    %s31 = sadd.s32 1, %s18
    %s32 = scalar_select %p29, %s31, %s18
    %p33 = scmp.ge.s32.totalorder %s32, 1
    %s34 = scalar_select %p33, 0, %s32
    %s35 = sadd.s32 1, %s17
    %s36 = scalar_select %p33, %s35, %s17
    %p37 = scmp.ge.s32.totalorder %s36, 4
    %s38 = scalar_select %p37, 0, %s36
    %s39 = sadd.s32 1, %s16
    %s40 = scalar_select %p37, %s39, %s16
    %p41 = scmp.ge.s32.totalorder %s40, 2
    %s42 = scalar_select %p41, 0, %s40
    %s43 = ssub.s32 %s16, %s42
    %s44 = ssub.s32 %s17, %s38
    %s45 = sor.u32 %s43, %s44
    %s46 = ssub.s32 %s18, %s34
    %s47 = sor.u32 %s45, %s46
    %p48 = scmp.eq.s32.totalorder %s47, 0
    %s50 = sadd.s32 %s49, 1
    %s51 = scalar_select %p48, %s49, %s50
    %p54 = pneg %p48
    %p55 = scmp.eq.s32.totalorder %s9, 7
    %p56 = por %p54, %p55
    %p57 = scmp.ne.s32.totalorder %s49, %s52
    %p58 = scmp.eq.s32.totalorder %s9, 0
    %p59 = por %p57, %p58
    %p60 = scmp.ne.s32.totalorder %s49, %s52
    %p61 = scmp.eq.s32.totalorder %s14, 7
    %p62 = por %p60, %p61
    %p63 = scmp.ne.s32.totalorder %s52, %s53
    %p64 = scmp.eq.s32.totalorder %s14, 0
    %p65 = por %p63, %p64
    %p66 = scmp.ne.s32.totalorder %s52, %s53
    %p67 = scmp.eq.s32.totalorder %s15, 7
    %p68 = por %p66, %p67
    %p70 = scmp.ne.s32.totalorder %s53, %s69
    %p71 = scmp.eq.s32.totalorder %s15, 0
    %p72 = por %p70, %p71
    %s73 = ssub.s32 %s16, %s42
    %s74 = ssub.s32 %s17, %s38
    %s75 = sor.u32 %s73, %s74
    %s76 = ssub.s32 %s19, %s30
    %s77 = sor.u32 %s75, %s76
    %p78 = scmp.eq.s32.totalorder %s77, 0
    %s80 = sadd.s32 %s79, 1
    %s81 = scalar_select %p78, %s79, %s80
    %p84 = pneg %p78
    %p85 = scmp.eq.s32.totalorder %s9, 7
    %p86 = por %p84, %p85
    %p87 = scmp.ne.s32.totalorder %s79, %s82
    %p88 = scmp.eq.s32.totalorder %s9, 0
    %p89 = por %p87, %p88
    %p90 = scmp.ne.s32.totalorder %s79, %s82
    %p91 = scmp.eq.s32.totalorder %s14, 7
    %p92 = por %p90, %p91
    %p93 = scmp.ne.s32.totalorder %s82, %s83
    %p94 = scmp.eq.s32.totalorder %s14, 0
    %p95 = por %p93, %p94
    %p96 = scmp.ne.s32.totalorder %s82, %s83
    %p97 = scmp.eq.s32.totalorder %s15, 7
    %p98 = por %p96, %p97
    %p100 = scmp.ne.s32.totalorder %s83, %s99
    %p101 = scmp.eq.s32.totalorder %s15, 0
    %p102 = por %p100, %p101
    %s103 = ssub.s32 %s16, %s42
    %s104 = ssub.s32 %s17, %s38
    %s105 = sor.u32 %s103, %s104
    %s106 = ssub.s32 %s19, %s30
    %s107 = sor.u32 %s105, %s106
    %p108 = scmp.eq.s32.totalorder %s107, 0
    %s110 = sadd.s32 %s109, 1
    %s111 = scalar_select %p108, %s109, %s110
    %p114 = pneg %p108
    %p115 = scmp.eq.s32.totalorder %s9, 7
    %p116 = por %p114, %p115
    %p117 = scmp.ne.s32.totalorder %s109, %s112
    %p118 = scmp.eq.s32.totalorder %s9, 0
    %p119 = por %p117, %p118
    %p120 = scmp.ne.s32.totalorder %s109, %s112
    %p121 = scmp.eq.s32.totalorder %s14, 7
    %p122 = por %p120, %p121
    %p123 = scmp.ne.s32.totalorder %s112, %s113
    %p124 = scmp.eq.s32.totalorder %s14, 0
    %p125 = por %p123, %p124
    %p126 = scmp.ne.s32.totalorder %s112, %s113
    %p127 = scmp.eq.s32.totalorder %s15, 7
    %p128 = por %p126, %p127
    %p130 = scmp.ne.s32.totalorder %s113, %s129
    %p131 = scmp.eq.s32.totalorder %s15, 0
    %p132 = por %p130, %p131
    %s133 = ssub.s32 %s16, %s42
    %s134 = ssub.s32 %s17, %s38
    %s135 = sor.u32 %s133, %s134
    %s136 = ssub.s32 %s18, %s34
    %s137 = sor.u32 %s135, %s136
    %p138 = scmp.eq.s32.totalorder %s137, 0
    %s140 = sadd.s32 %s139, 1
    %s141 = scalar_select %p138, %s139, %s140
    %p144 = pneg %p138
    %p145 = scmp.eq.s32.totalorder %s9, 7
    %p146 = por %p144, %p145
    %p147 = scmp.ne.s32.totalorder %s139, %s142
    %p148 = scmp.eq.s32.totalorder %s9, 0
    %p149 = por %p147, %p148
    %p150 = scmp.ne.s32.totalorder %s139, %s142
    %p151 = scmp.eq.s32.totalorder %s14, 7
    %p152 = por %p150, %p151
    %p153 = scmp.ne.s32.totalorder %s142, %s143
    %p154 = scmp.eq.s32.totalorder %s14, 0
    %p155 = por %p153, %p154
    %p156 = scmp.ne.s32.totalorder %s142, %s143
    %p157 = scmp.eq.s32.totalorder %s15, 7
    %p158 = por %p156, %p157
    %p160 = scmp.ne.s32.totalorder %s143, %s159
    %p161 = scmp.eq.s32.totalorder %s15, 0
    %p162 = por %p160, %p161
    %p163 = scmp.le.s32.totalorder 1, %s9
    %p164 = scmp.lt.s32.totalorder %s9, 9
    %p165 = pnand %p163, %p164
    %p166 = pneg %p165
    // Predicated region
    $region9: #{causal_self_attention.4} parent=5 // pred_check
      _
    $region10: #{causal_self_attention.4} parent=5 // pred_check_branch
      %168 = sbr.rel (%p165) target = $region12
    $region11: #{causal_self_attention.4} parent=5 // pred_region
      %s169 = ssub.s32 %s9, 1
    $region12: #{causal_self_attention.4} parent=5 // pred_fallthru
      _
    %p170 = scmp.lt.s32.totalorder %s9, 8
    // Predicated region
    $region13: #{causal_self_attention.4} parent=5 // pred_check
      %p171 = pneg %p170
    $region14: #{causal_self_attention.4} parent=5 // pred_check_branch
      %173 = sbr.rel (%p171) target = $region16
    $region15: #{causal_self_attention.4} parent=5 // pred_region
      // Predicated region
      $region17: #{causal_self_attention.4} parent=15 // pred_check
        %p174 = pneg %p59
      $region18: #{causal_self_attention.4} parent=15 // pred_check_branch
        %176 = sbr.rel (%p174) target = $region20
      $region19: #{causal_self_attention.4} parent=15 // pred_region
        %p177 = scmp.lt.s32.totalorder %s16, 1
        %s178 = scalar_select %p177, %s16, 1
        %p179 = scmp.lt.s32.totalorder %s17, 3
        %s180 = scalar_select %p179, %s17, 3
        %p181 = scmp.lt.s32.totalorder %s18, 0
        %s182 = scalar_select %p181, %s18, 0
        %s183 = sadd.s32 %s182, %s180
        %s184 = smul.addr %s178, 4
        %s185 = sadd.s32 %s183, %s184
        %s186 = smul.addr %s185, 4
        %s187 = scalar_lea.vmem %s0, %s186
      $region20: #{causal_self_attention.4} parent=15 // pred_fallthru
        _
      // Predicated region
      $region21: #{causal_self_attention.4} parent=15 // pred_check
        %p188 = pneg %p89
      $region22: #{causal_self_attention.4} parent=15 // pred_check_branch
        %190 = sbr.rel (%p188) target = $region24
      $region23: #{causal_self_attention.4} parent=15 // pred_region
        %p191 = scmp.lt.s32.totalorder %s16, 1
        %s192 = scalar_select %p191, %s16, 1
        %p193 = scmp.lt.s32.totalorder %s17, 3
        %s194 = scalar_select %p193, %s17, 3
        %p195 = scmp.lt.s32.totalorder %s19, 0
        %s196 = scalar_select %p195, %s19, 0
        %s197 = sadd.s32 %s196, %s194
        %s198 = smul.addr %s192, 4
        %s199 = sadd.s32 %s197, %s198
        %s200 = smul.addr %s199, 4
        %s201 = scalar_lea.vmem %s1, %s200
      $region24: #{causal_self_attention.4} parent=15 // pred_fallthru
        _
      // Predicated region
      $region25: #{causal_self_attention.4} parent=15 // pred_check
        %p202 = pneg %p119
      $region26: #{causal_self_attention.4} parent=15 // pred_check_branch
        %204 = sbr.rel (%p202) target = $region28
      $region27: #{causal_self_attention.4} parent=15 // pred_region
        %p205 = scmp.lt.s32.totalorder %s16, 1
        %s206 = scalar_select %p205, %s16, 1
        %p207 = scmp.lt.s32.totalorder %s17, 3
        %s208 = scalar_select %p207, %s17, 3
        %p209 = scmp.lt.s32.totalorder %s19, 0
        %s210 = scalar_select %p209, %s19, 0
        %s211 = sadd.s32 %s210, %s208
        %s212 = smul.addr %s206, 4
        %s213 = sadd.s32 %s211, %s212
        %s214 = smul.addr %s213, 4
        %s215 = scalar_lea.vmem %s2, %s214
      $region28: #{causal_self_attention.4} parent=15 // pred_fallthru
        _
    $region16: #{causal_self_attention.4} parent=5 // pred_fallthru
      _
    %p216 = scmp.le.s32.totalorder 1, %s9
    %p217 = scmp.lt.s32.totalorder %s9, 9
    %p218 = pnand %p216, %p217
    %p219 = pneg %p218
    // Predicated region
    $region29: #{causal_self_attention.4} parent=5 // pred_check
      _
    $region30: #{causal_self_attention.4} parent=5 // pred_check_branch
      %221 = sbr.rel (%p218) target = $region32
    $region31: #{causal_self_attention.4} parent=5 // pred_region
      %s222 = ssub.s32 %s9, 1
      %p223 = scmp.lt.s32.totalorder %s20, 1
      %s224 = scalar_select %p223, %s20, 1
      %p225 = scmp.lt.s32.totalorder %s21, 3
      %s226 = scalar_select %p225, %s21, 3
      %p227 = scmp.lt.s32.totalorder %s22, 0
      %s228 = scalar_select %p227, %s22, 0
      %s229 = sadd.s32 %s228, %s226
      %s230 = smul.addr %s224, 4
      %s231 = sadd.s32 %s229, %s230
      %s232 = smul.addr %s231, 4
      %s233 = scalar_lea.vmem %s0, %s232
      %p234 = pneg %p65
      %p235 = pneg %p62
      %p236 = scmp.lt.s32.totalorder %s20, 1
      %s237 = scalar_select %p236, %s20, 1
      %p238 = scmp.lt.s32.totalorder %s21, 3
      %s239 = scalar_select %p238, %s21, 3
      %p240 = scmp.lt.s32.totalorder %s23, 0
      %s241 = scalar_select %p240, %s23, 0
      %s242 = sadd.s32 %s241, %s239
      %s243 = smul.addr %s237, 4
      %s244 = sadd.s32 %s242, %s243
      %s245 = smul.addr %s244, 4
      %s246 = scalar_lea.vmem %s1, %s245
      %p247 = pneg %p95
      %p248 = pneg %p92
      %p249 = scmp.lt.s32.totalorder %s20, 1
      %s250 = scalar_select %p249, %s20, 1
      %p251 = scmp.lt.s32.totalorder %s21, 3
      %s252 = scalar_select %p251, %s21, 3
      %p253 = scmp.lt.s32.totalorder %s23, 0
      %s254 = scalar_select %p253, %s23, 0
      %s255 = sadd.s32 %s254, %s252
      %s256 = smul.addr %s250, 4
      %s257 = sadd.s32 %s255, %s256
      %s258 = smul.addr %s257, 4
      %s259 = scalar_lea.vmem %s2, %s258
      %p260 = pneg %p125
      %p261 = pneg %p122
      %p262 = pneg %p155
      %p263 = pneg %p152
      %p264 = scmp.lt.s32.totalorder %s20, 1
      %s265 = scalar_select %p264, %s20, 1
      %p266 = scmp.lt.s32.totalorder %s21, 3
      %s267 = scalar_select %p266, %s21, 3
      %p268 = scmp.lt.s32.totalorder %s22, 0
      %s269 = scalar_select %p268, %s22, 0
      %s270 = sadd.s32 %s269, %s267
      %s271 = smul.addr %s265, 4
      %s272 = sadd.s32 %s270, %s271
      %s273 = smul.addr %s272, 4
      %s274 = scalar_lea.vmem %s3, %s273
      %p275 = scmp.lt.s32.totalorder %s20, 1
      %s276 = scalar_select %p275, %s20, 1
      %p277 = scmp.lt.s32.totalorder %s21, 3
      %s278 = scalar_select %p277, %s21, 3
      %p279 = scmp.lt.s32.totalorder %s22, 0
      %s280 = scalar_select %p279, %s22, 0
      %s281 = sadd.s32 %s280, %s278
      %s282 = smul.addr %s276, 4
      %s283 = sadd.s32 %s281, %s282
      %s284 = smul.addr %s283, 4
      %s285 = scalar_lea.vmem %s0, %s284
      %p286 = scmp.lt.s32.totalorder %s20, 1
      %s287 = scalar_select %p286, %s20, 1
      %p288 = scmp.lt.s32.totalorder %s21, 3
      %s289 = scalar_select %p288, %s21, 3
      %p290 = scmp.lt.s32.totalorder %s23, 0
      %s291 = scalar_select %p290, %s23, 0
      %s292 = sadd.s32 %s291, %s289
      %s293 = smul.addr %s287, 4
      %s294 = sadd.s32 %s292, %s293
      %s295 = smul.addr %s294, 4
      %s296 = scalar_lea.vmem %s1, %s295
      %p297 = scmp.lt.s32.totalorder %s20, 1
      %s298 = scalar_select %p297, %s20, 1
      %p299 = scmp.lt.s32.totalorder %s21, 3
      %s300 = scalar_select %p299, %s21, 3
      %p301 = scmp.lt.s32.totalorder %s23, 0
      %s302 = scalar_select %p301, %s23, 0
      %s303 = sadd.s32 %s302, %s300
      %s304 = smul.addr %s298, 4
      %s305 = sadd.s32 %s303, %s304
      %s306 = smul.addr %s305, 4
      %s307 = scalar_lea.vmem %s2, %s306
      %p308 = scmp.lt.s32.totalorder %s20, 1
      %s309 = scalar_select %p308, %s20, 1
      %p310 = scmp.lt.s32.totalorder %s21, 3
      %s311 = scalar_select %p310, %s21, 3
      %p312 = scmp.lt.s32.totalorder %s22, 0
      %s313 = scalar_select %p312, %s22, 0
      %s314 = sadd.s32 %s313, %s311
      %s315 = smul.addr %s309, 4
      %s316 = sadd.s32 %s314, %s315
      %s317 = smul.addr %s316, 4
      %s318 = scalar_lea.vmem %s3, %s317
      %p320 = scmp.eq.s32.totalorder %s23, 0
      // Predicated region
      $region33: #{causal_self_attention.4} parent=31 // pred_check
        %p321 = pneg %p320
      $region34: #{causal_self_attention.4} parent=31 // pred_check_branch
        %323 = sbr.rel (%p321) target = $region36
      $region35: #{causal_self_attention.4} parent=31 // pred_region
        %vm324 = vcmask 7168
        %325 = vst.msk [vmem:[#allocation2] sm:$0xff] %vm324, -inf
        %326 = vst.msk [vmem:[#allocation3] sm:$0xff] %vm324, 0.0
        %vm327 = vcmask 64512
        %328 = vst.msk [vmem:[#allocation4] sm:$0xff] %vm327, 0.0
      $region36: #{causal_self_attention.4} parent=31 // pred_fallthru
        _
      %s329 = smul.u32 %s22, 8
      %s330 = smul.u32 %s23, 8
      %s331 = sadd.s32 %s330, 7
      %p332 = scmp.le.s32.totalorder %s331, %s329
      %p333 = scmp.gt.s32.totalorder %s331, %s329
      %s334 = sadd.s32 %s329, 7
      %p335 = scmp.le.s32.totalorder %s330, %s334
      %p336 = pnand %p333, %p335
      %p337 = pneg %p336
      // Predicated region
      $region37: #{causal_self_attention.4} parent=31 // pred_check
        %p338 = pneg %p332
      $region38: #{causal_self_attention.4} parent=31 // pred_check_branch
        %340 = sbr.rel (%p338) target = $region40
      $region39: #{causal_self_attention.4} parent=31 // pred_region
        %v341 = vld [vmem:[%s285] sm:$0xf]
        %v342 = vld [vmem:[%s296] sm:$0xf]
        %v343 = vld [vmem:[%s307] sm:$0xf]
        %vm344 = vcmask 64512
        %v346 = vsel %vm344, %v341, 0
        %v349 = vsel %vm344, %v342, 0
        %351 = vmatprep.subr.bf16.mxu0 0
        %352 = vmatpush1.bf16.xpose.msra.mxu0 0
        %353 = vmatprep.subr.bf16.mxu0 0
        %354 = vmatpush1.bf16.xpose.msra.mxu0 0
        %355 = vmatprep.subr.bf16.mxu0 0
        %356 = vmatpush1.bf16.xpose.msra.mxu0 0
        %357 = vmatprep.subr.bf16.mxu0 0
        %358 = vmatpush1.bf16.xpose.msra.mxu0 0
        %359 = vmatprep.subr.bf16.mxu0 0
        %360 = vmatpush1.bf16.xpose.msra.mxu0 0
        %361 = vmatprep.subr.bf16.mxu0 0
        %362 = vmatpush1.bf16.xpose.msra.mxu0 0
        %363 = vmatprep.subr.bf16.mxu0 0
        %364 = vmatpush1.bf16.xpose.msra.mxu0 0
        %365 = vmatprep.subr.bf16.mxu0 0
        %366 = vmatpush1.bf16.xpose.msra.mxu0 %v349
        %367 = vmatprep.subr.bf16.mxu0 0
        %368 = vmatpush2.bf16.xpose.msra.mxu0 0
        %369 = vmatprep.subr.bf16.mxu0 0
        %370 = vmatpush2.bf16.xpose.msra.mxu0 0
        %371 = vmatprep.subr.bf16.mxu0 0
        %372 = vmatpush2.bf16.xpose.msra.mxu0 0
        %373 = vmatprep.subr.bf16.mxu0 0
        %374 = vmatpush2.bf16.xpose.msra.mxu0 0
        %375 = vmatprep.subr.bf16.mxu0 0
        %376 = vmatpush2.bf16.xpose.msra.mxu0 0
        %377 = vmatprep.subr.bf16.mxu0 0
        %378 = vmatpush2.bf16.xpose.msra.mxu0 0
        %379 = vmatprep.subr.bf16.mxu0 0
        %380 = vmatpush2.bf16.xpose.msra.mxu0 0
        %381 = vmatprep.subr.bf16.mxu0 0
        %382 = vmatpush2.bf16.xpose.msra.mxu0 0
        %383 = vmatprep.mubr.bf16.mxu0 0
        %384 = vmatmul.mubr.bf16.gmra.mxu0 %v346
        %v385 = vpop.f32.mrf.mxu0
        %v386 = vadd.f32 0.0, %v385
        %v387 = vpop.f32.mrf.mxu0
        %v388 = vpop.f32.mrf.mxu0
        %v389 = vpop.f32.mrf.mxu0
        %390 = vdwg.mxu0
        %v391 = vmul.f32 %v386, 0.35355338
        %v392 = vld [vmem:[#allocation2] sm:$0xff]
        %v393 = vsel %vm344, %v391, -inf
        %394 = vmax.xlane.f32.xlu0 %v393
        %v395 = vpop.xlane.xlu0 %394
        %v396 = vmax.f32 %v392, %v395
        %v397 = vsub.f32 %v392, %v396
        %v398 = vmul.f32 %v397, 1.442695
        %v399 = vpow.pop %v398
        %401 = vset.pattern.permute.xlu0 0
        %402 = vperm.xlu0 %401, %v396
        %v403 = vpop.permute.xlu0 %402
        %v405 = vsub.f32 %v391, %v403
        %v406 = vmul.f32 %v405, 1.442695
        %v407 = vpow.pop %v406
        %v408 = vld [vmem:[#allocation3] sm:$0xff]
        %v409 = vmul.f32 %v399, %v408
        %v410 = vsel %vm344, %v407, 0.0
        %411 = vadd.xlane.f32.xlu0 %v410
        %v412 = vpop.xlane.xlu0 %411
        %v413 = vadd.f32 %v409, %v412
        %vm414 = vcmask 7168
        %415 = vst.msk [vmem:[#allocation3] sm:$0xff] %vm414, %v413
        %v416 = vld [vmem:[#allocation4] sm:$0xff]
        %418 = vset.pattern.permute.xlu0 0
        %419 = vperm.xlu0 %418, %v399
        %v420 = vpop.permute.xlu0 %419
        %v422 = vmul.f32 %v420, %v416
        %v423 = vpack.c.bf16 %v407, %v407
        %v425 = vsel %vm344, %v423, 0
        %vm427 = vcmask 1043456
        %v429 = vsel %vm427, %v343, 0
        %431 = vmatprep.subr.bf16.mxu0 0
        %432 = vmatpush1.bf16.msra.mxu0 0
        %433 = vmatprep.subr.bf16.mxu0 0
        %434 = vmatpush1.bf16.msra.mxu0 0
        %435 = vmatprep.subr.bf16.mxu0 0
        %436 = vmatpush1.bf16.msra.mxu0 0
        %437 = vmatprep.subr.bf16.mxu0 0
        %438 = vmatpush1.bf16.msra.mxu0 0
        %439 = vmatprep.subr.bf16.mxu0 0
        %440 = vmatpush1.bf16.msra.mxu0 0
        %441 = vmatprep.subr.bf16.mxu0 0
        %442 = vmatpush1.bf16.msra.mxu0 0
        %443 = vmatprep.subr.bf16.mxu0 0
        %444 = vmatpush1.bf16.msra.mxu0 0
        %445 = vmatprep.subr.bf16.mxu0 0
        %446 = vmatpush1.bf16.msra.mxu0 %v429
        %447 = vmatprep.subr.bf16.mxu0 0
        %448 = vmatpush2.bf16.msra.mxu0 0
        %449 = vmatprep.subr.bf16.mxu0 0
        %450 = vmatpush2.bf16.msra.mxu0 0
        %451 = vmatprep.subr.bf16.mxu0 0
        %452 = vmatpush2.bf16.msra.mxu0 0
        %453 = vmatprep.subr.bf16.mxu0 0
        %454 = vmatpush2.bf16.msra.mxu0 0
        %455 = vmatprep.subr.bf16.mxu0 0
        %456 = vmatpush2.bf16.msra.mxu0 0
        %457 = vmatprep.subr.bf16.mxu0 0
        %458 = vmatpush2.bf16.msra.mxu0 0
        %459 = vmatprep.subr.bf16.mxu0 0
        %460 = vmatpush2.bf16.msra.mxu0 0
        %461 = vmatprep.subr.bf16.mxu0 0
        %462 = vmatpush2.bf16.msra.mxu0 0
        %463 = vmatprep.mubr.bf16.mxu0 0
        %464 = vmatmul.mubr.bf16.gmra.mxu0 %v425
        %v465 = vpop.f32.mrf.mxu0
        %v466 = vadd.f32 0.0, %v465
        %v467 = vpop.f32.mrf.mxu0
        %v468 = vpop.f32.mrf.mxu0
        %v469 = vpop.f32.mrf.mxu0
        %470 = vdwg.mxu0
        %v471 = vadd.f32 %v422, %v466
        %472 = vst.msk [vmem:[#allocation4] sm:$0xff] %vm344, %v471
        %473 = vst.msk [vmem:[#allocation2] sm:$0xff] %vm414, %v396
      $region40: #{causal_self_attention.4} parent=31 // pred_fallthru
        _
      // Predicated region
      $region41: #{causal_self_attention.4} parent=31 // pred_check
        _
      $region42: #{causal_self_attention.4} parent=31 // pred_check_branch
        %475 = sbr.rel (%p336) target = $region44
      $region43: #{causal_self_attention.4} parent=31 // pred_region
        %v476 = vld [vmem:[%s285] sm:$0xf]
        %v477 = vld [vmem:[%s296] sm:$0xf]
        %v478 = vld [vmem:[%s307] sm:$0xf]
        %vm479 = vcmask 64512
        %v481 = vsel %vm479, %v476, 0
        %v484 = vsel %vm479, %v477, 0
        %486 = vmatprep.subr.bf16.mxu0 0
        %487 = vmatpush1.bf16.xpose.msra.mxu0 0
        %488 = vmatprep.subr.bf16.mxu0 0
        %489 = vmatpush1.bf16.xpose.msra.mxu0 0
        %490 = vmatprep.subr.bf16.mxu0 0
        %491 = vmatpush1.bf16.xpose.msra.mxu0 0
        %492 = vmatprep.subr.bf16.mxu0 0
        %493 = vmatpush1.bf16.xpose.msra.mxu0 0
        %494 = vmatprep.subr.bf16.mxu0 0
        %495 = vmatpush1.bf16.xpose.msra.mxu0 0
        %496 = vmatprep.subr.bf16.mxu0 0
        %497 = vmatpush1.bf16.xpose.msra.mxu0 0
        %498 = vmatprep.subr.bf16.mxu0 0
        %499 = vmatpush1.bf16.xpose.msra.mxu0 0
        %500 = vmatprep.subr.bf16.mxu0 0
        %501 = vmatpush1.bf16.xpose.msra.mxu0 %v484
        %502 = vmatprep.subr.bf16.mxu0 0
        %503 = vmatpush2.bf16.xpose.msra.mxu0 0
        %504 = vmatprep.subr.bf16.mxu0 0
        %505 = vmatpush2.bf16.xpose.msra.mxu0 0
        %506 = vmatprep.subr.bf16.mxu0 0
        %507 = vmatpush2.bf16.xpose.msra.mxu0 0
        %508 = vmatprep.subr.bf16.mxu0 0
        %509 = vmatpush2.bf16.xpose.msra.mxu0 0
        %510 = vmatprep.subr.bf16.mxu0 0
        %511 = vmatpush2.bf16.xpose.msra.mxu0 0
        %512 = vmatprep.subr.bf16.mxu0 0
        %513 = vmatpush2.bf16.xpose.msra.mxu0 0
        %514 = vmatprep.subr.bf16.mxu0 0
        %515 = vmatpush2.bf16.xpose.msra.mxu0 0
        %516 = vmatprep.subr.bf16.mxu0 0
        %517 = vmatpush2.bf16.xpose.msra.mxu0 0
        %518 = vmatprep.mubr.bf16.mxu0 0
        %519 = vmatmul.mubr.bf16.gmra.mxu0 %v481
        %v520 = vpop.f32.mrf.mxu0
        %v521 = vadd.f32 0.0, %v520
        %v522 = vpop.f32.mrf.mxu0
        %v523 = vpop.f32.mrf.mxu0
        %v524 = vpop.f32.mrf.mxu0
        %525 = vdwg.mxu0
        %v526 = vmul.f32 %v521, 0.35355338
        %v527 = vlaneseq
        %v528 = vshrl.u32 %v527, 7
        %v529 = vstv %s329
        %v530 = vadd.s32 %v529, %v528
        %v531 = vlaneseq
        %v532 = vand.u32 %v531, 127
        %v533 = vstv %s330
        %v534 = vadd.s32 %v533, %v532
        %vm535 = vcmp.le.s32.totalorder %v534, %v530
        %v536 = vsel %vm535, %v526, -1e+30
        %v537 = vld [vmem:[#allocation2] sm:$0xff]
        %v538 = vsel %vm479, %v536, -inf
        %539 = vmax.xlane.f32.xlu0 %v538
        %v540 = vpop.xlane.xlu0 %539
        %v541 = vmax.f32 %v537, %v540
        %v542 = vsub.f32 %v537, %v541
        %v543 = vmul.f32 %v542, 1.442695
        %v544 = vpow.pop %v543
        %546 = vset.pattern.permute.xlu0 0
        %547 = vperm.xlu0 %546, %v541
        %v548 = vpop.permute.xlu0 %547
        %v550 = vsub.f32 %v536, %v548
        %v551 = vmul.f32 %v550, 1.442695
        %v552 = vpow.pop %v551
        %v553 = vld [vmem:[#allocation3] sm:$0xff]
        %v554 = vmul.f32 %v544, %v553
        %v555 = vsel %vm479, %v552, 0.0
        %556 = vadd.xlane.f32.xlu0 %v555
        %v557 = vpop.xlane.xlu0 %556
        %v558 = vadd.f32 %v554, %v557
        %vm559 = vcmask 7168
        %560 = vst.msk [vmem:[#allocation3] sm:$0xff] %vm559, %v558
        %v561 = vld [vmem:[#allocation4] sm:$0xff]
        %563 = vset.pattern.permute.xlu0 0
        %564 = vperm.xlu0 %563, %v544
        %v565 = vpop.permute.xlu0 %564
        %v567 = vmul.f32 %v565, %v561
        %v568 = vpack.c.bf16 %v552, %v552
        %v570 = vsel %vm479, %v568, 0
        %vm572 = vcmask 1043456
        %v574 = vsel %vm572, %v478, 0
        %576 = vmatprep.subr.bf16.mxu0 0
        %577 = vmatpush1.bf16.msra.mxu0 0
        %578 = vmatprep.subr.bf16.mxu0 0
        %579 = vmatpush1.bf16.msra.mxu0 0
        %580 = vmatprep.subr.bf16.mxu0 0
        %581 = vmatpush1.bf16.msra.mxu0 0
        %582 = vmatprep.subr.bf16.mxu0 0
        %583 = vmatpush1.bf16.msra.mxu0 0
        %584 = vmatprep.subr.bf16.mxu0 0
        %585 = vmatpush1.bf16.msra.mxu0 0
        %586 = vmatprep.subr.bf16.mxu0 0
        %587 = vmatpush1.bf16.msra.mxu0 0
        %588 = vmatprep.subr.bf16.mxu0 0
        %589 = vmatpush1.bf16.msra.mxu0 0
        %590 = vmatprep.subr.bf16.mxu0 0
        %591 = vmatpush1.bf16.msra.mxu0 %v574
        %592 = vmatprep.subr.bf16.mxu0 0
        %593 = vmatpush2.bf16.msra.mxu0 0
        %594 = vmatprep.subr.bf16.mxu0 0
        %595 = vmatpush2.bf16.msra.mxu0 0
        %596 = vmatprep.subr.bf16.mxu0 0
        %597 = vmatpush2.bf16.msra.mxu0 0
        %598 = vmatprep.subr.bf16.mxu0 0
        %599 = vmatpush2.bf16.msra.mxu0 0
        %600 = vmatprep.subr.bf16.mxu0 0
        %601 = vmatpush2.bf16.msra.mxu0 0
        %602 = vmatprep.subr.bf16.mxu0 0
        %603 = vmatpush2.bf16.msra.mxu0 0
        %604 = vmatprep.subr.bf16.mxu0 0
        %605 = vmatpush2.bf16.msra.mxu0 0
        %606 = vmatprep.subr.bf16.mxu0 0
        %607 = vmatpush2.bf16.msra.mxu0 0
        %608 = vmatprep.mubr.bf16.mxu0 0
        %609 = vmatmul.mubr.bf16.gmra.mxu0 %v570
        %v610 = vpop.f32.mrf.mxu0
        %v611 = vadd.f32 0.0, %v610
        %v612 = vpop.f32.mrf.mxu0
        %v613 = vpop.f32.mrf.mxu0
        %v614 = vpop.f32.mrf.mxu0
        %615 = vdwg.mxu0
        %v616 = vadd.f32 %v567, %v611
        %617 = vst.msk [vmem:[#allocation4] sm:$0xff] %vm479, %v616
        %618 = vst.msk [vmem:[#allocation2] sm:$0xff] %vm559, %v541
      $region44: #{causal_self_attention.4} parent=31 // pred_fallthru
        _
      // Predicated region
      $region45: #{causal_self_attention.4} parent=31 // pred_check
        %p619 = pneg %p320
      $region46: #{causal_self_attention.4} parent=31 // pred_check_branch
        %621 = sbr.rel (%p619) target = $region48
      $region47: #{causal_self_attention.4} parent=31 // pred_region
        %v622 = vld [vmem:[#allocation4] sm:$0xff]
        %v623 = vld [vmem:[#allocation3] sm:$0xff]
        %v624 = vrcp.pop %v623
        %626 = vset.pattern.permute.xlu0 0
        %627 = vperm.xlu0 %626, %v624
        %v628 = vpop.permute.xlu0 %627
        %v630 = vmul.f32 %v622, %v628
        %v631 = vpack.c.bf16 %v630, %v630
        %vm632 = vcmask 60416
        %633 = vst.msk [vmem:[%s318] sm:$0xf] %vm632, %v631
      $region48: #{causal_self_attention.4} parent=31 // pred_fallthru
        _
      %p634 = scmp.lt.s32.totalorder %s20, 1
      %s635 = scalar_select %p634, %s20, 1
      %p636 = scmp.lt.s32.totalorder %s21, 3
      %s637 = scalar_select %p636, %s21, 3
      %p638 = scmp.lt.s32.totalorder %s22, 0
      %s639 = scalar_select %p638, %s22, 0
      %s640 = sadd.s32 %s639, %s637
      %s641 = smul.addr %s635, 4
      %s642 = sadd.s32 %s640, %s641
      %s643 = smul.addr %s642, 4
      %s644 = scalar_lea.vmem %s3, %s643
      // Predicated region
      $region49: #{causal_self_attention.4} parent=31 // pred_check
        %p645 = pneg %p152
      $region50: #{causal_self_attention.4} parent=31 // pred_check_branch
        %647 = sbr.rel (%p645) target = $region52
      $region51: #{causal_self_attention.4} parent=31 // pred_region
        _
      $region52: #{causal_self_attention.4} parent=31 // pred_fallthru
        _
    $region32: #{causal_self_attention.4} parent=5 // pred_fallthru
      _
    %p648 = scmp.le.s32.totalorder 2, %s9
    // Predicated region
    $region53: #{causal_self_attention.4} parent=5 // pred_check
      %p649 = pneg %p648
    $region54: #{causal_self_attention.4} parent=5 // pred_check_branch
      %651 = sbr.rel (%p649) target = $region56
    $region55: #{causal_self_attention.4} parent=5 // pred_region
      %s652 = ssub.s32 %s9, 2
      // Predicated region
      $region57: #{causal_self_attention.4} parent=55 // pred_check
        %p653 = pneg %p158
      $region58: #{causal_self_attention.4} parent=55 // pred_check_branch
        %655 = sbr.rel (%p653) target = $region60
      $region59: #{causal_self_attention.4} parent=55 // pred_region
        %p656 = scmp.lt.s32.totalorder %s24, 1
        %s657 = scalar_select %p656, %s24, 1
        %p658 = scmp.lt.s32.totalorder %s25, 3
        %s659 = scalar_select %p658, %s25, 3
        %p660 = scmp.lt.s32.totalorder %s26, 0
        %s661 = scalar_select %p660, %s26, 0
        %s662 = sadd.s32 %s661, %s659
        %s663 = smul.addr %s657, 4
        %s664 = sadd.s32 %s662, %s663
        %s665 = smul.addr %s664, 4
        %s666 = scalar_lea.vmem %s3, %s665
      $region60: #{causal_self_attention.4} parent=55 // pred_fallthru
        _
    $region56: #{causal_self_attention.4} parent=5 // pred_fallthru
      _
  $region6: #{causal_self_attention.4} parent=0 // loop_footer
    %s13 = sadd.s32 1, %s9
  $region7: #{causal_self_attention.4} parent=0 // loop_footer_branch
    %8 = sbr.rel target = $region3
  $region8: #{causal_self_attention.4} parent=0 // loop_exit
    _

</llo_original>
